<compile_context>
chip_gen: v6e
topology: v6e:2x2x1
jax: 0.10.0
libtpu: 0.0.40
codegen_flags: <defaults>
</compile_context>

<pallas_src>
import jax
import jax.numpy as jnp
from jax.experimental import pallas as pl
from jax.experimental.pallas import tpu as pltpu

K = 7      # kernel_size
PAD = 3    # padding for kernel_size=7


def spatial_attention_kernel(x_ref, w_ref, o_ref, acc_ref, padf_ref):
    # x_ref   : (1, CT, H, W)   VMEM  - one batch element, one channel tile
    # w_ref   : (2*K*K,)        SMEM  - conv weight, avg branch pre-scaled by 1/C
    # o_ref   : (1, H, W)       VMEM  - attention map for this batch element
    # acc_ref : (2, H, W)  f32  VMEM scratch - running [channel-sum, channel-max]
    # padf_ref: (2, Hp, Wp) f32 VMEM scratch - zero-padded features (finalize)
    c_step = pl.program_id(1)
    n_csteps = pl.num_programs(1)
    CT = x_ref.shape[1]
    H = o_ref.shape[1]
    W = o_ref.shape[2]

    # ---- fused single-pass channel sum + max over this channel tile --------
    s = x_ref[0, 0].astype(jnp.float32)
    m = s
    for c in range(1, CT):
        xc = x_ref[0, c].astype(jnp.float32)
        s = s + xc
        m = jnp.maximum(m, xc)

    @pl.when(c_step == 0)
    def _():
        acc_ref[0] = s
        acc_ref[1] = m

    @pl.when(c_step > 0)
    def _():
        acc_ref[0] = acc_ref[0] + s
        acc_ref[1] = jnp.maximum(acc_ref[1], m)

    # ---- finalize: zero-padded 7x7 conv over [sum/C, max] + sigmoid --------
    @pl.when(c_step == n_csteps - 1)
    def _():
        # Zero padding of the 2-channel feature map (matches conv padding=3).
        padf_ref[...] = jnp.zeros_like(padf_ref)
        padf_ref[:, PAD:PAD + H, PAD:PAD + W] = acc_ref[...]
        feat = padf_ref[...]                          # (2, Hp, Wp) f32

        # 98 weight scalars from SMEM, hoisted off the accumulation chain.
        wv = [w_ref[i] for i in range(2 * K * K)]

        # 4 independent accumulator chains (one per VALU slot), round-robin.
        accs = [jnp.zeros((H, W), jnp.float32) for _ in range(4)]
        i = 0
        for c in range(2):
            for ky in range(K):
                for kx in range(K):
                    accs[i % 4] = accs[i % 4] + wv[i] * feat[c, ky:ky + H, kx:kx + W]
                    i += 1
        conv = (accs[0] + accs[1]) + (accs[2] + accs[3])

        o_ref[0] = jax.nn.sigmoid(conv).astype(o_ref.dtype)


def _largest_divisor_leq(n, cap):
    cap = max(1, min(n, cap))
    for t in range(cap, 0, -1):
        if n % t == 0:
            return t
    return 1


def spatial_attention(x, conv_weight, *, c_tile=None):
    """x: (N, C, H, W);  conv_weight: (1, 2, K, K) as in nn.Conv2d(2, 1, 7, bias=False)."""
    N, C, H, W = x.shape
    Hp, Wp = H + 2 * PAD, W + 2 * PAD

    if c_tile is None:
        # Keep the per-step input block around <= ~2 MiB so double-buffering
        # fits the scoped VMEM defaults on all generations (16/32 MiB).
        cap = max(1, (2 << 20) // max(1, H * W * x.dtype.itemsize))
        c_tile = _largest_divisor_leq(C, cap)
    assert C % c_tile == 0, "c_tile must divide C"
    n_csteps = C // c_tile

    # Fold the 1/C of the channel mean into the avg-branch weights (conv is
    # linear), so the kernel only needs the running channel SUM.
    w = conv_weight.astype(jnp.float32).reshape(2, K, K)
    w = w * jnp.array([1.0 / C, 1.0], jnp.float32)[:, None, None]
    w_flat = w.reshape(2 * K * K)

    out = pl.pallas_call(
        spatial_attention_kernel,
        out_shape=jax.ShapeDtypeStruct((N, H, W), x.dtype),
        grid_spec=pltpu.PrefetchScalarGridSpec(
            num_scalar_prefetch=0,
            grid=(N, n_csteps),
            in_specs=[
                pl.BlockSpec((1, c_tile, H, W), lambda n, c: (n, c, 0, 0)),
                pl.BlockSpec(memory_space=pltpu.MemorySpace.SMEM),
            ],
            out_specs=pl.BlockSpec((1, H, W), lambda n, c: (n, 0, 0)),
            scratch_shapes=[
                pltpu.VMEM((2, H, W), jnp.float32),
                pltpu.VMEM((2, Hp, Wp), jnp.float32),
            ],
        ),
        compiler_params=pltpu.CompilerParams(
            dimension_semantics=("parallel", "arbitrary")),
    )(x, w_flat)

    return out[:, None, :, :]   # back to (N, 1, H, W)


def spatial_attention_ref(x, conv_weight):
    """Pure-JAX reference (matches the PyTorch forward exactly)."""
    avg_out = jnp.mean(x, axis=1, keepdims=True)
    max_out = jnp.max(x, axis=1, keepdims=True)
    feat = jnp.concatenate([avg_out, max_out], axis=1)          # (N, 2, H, W)
    y = jax.lax.conv_general_dilated(
        feat, conv_weight,
        window_strides=(1, 1),
        padding=((PAD, PAD), (PAD, PAD)),
        dimension_numbers=("NCHW", "OIHW", "NCHW"),
    )
    return jax.nn.sigmoid(y)


if __name__ == "__main__":
    key = jax.random.PRNGKey(0)
    kx, kw = jax.random.split(key)

    # Small shapes consistent with the module: batch=2, channels=4, 16x16 spatial.
    x = jax.random.normal(kx, (2, 4, 16, 16), dtype=jnp.float32)
    # nn.Conv2d(2, 1, 7, bias=False) weight: (out=1, in=2, 7, 7), deterministic init.
    conv_weight = 0.05 * jax.random.normal(kw, (1, 2, K, K), dtype=jnp.float32)

    out = spatial_attention(x, conv_weight)
    out = jax.block_until_ready(out)

    ref = spatial_attention_ref(x, conv_weight)
    assert out.shape == (2, 1, 16, 16)
    assert jnp.allclose(out, ref, rtol=1e-4, atol=1e-5), "mismatch vs reference"

    print("KERNEL_OK")
</pallas_src>

<mosaic_0001>
module attributes {stable_mosaic.version = 11 : i64} {
  func.func @spatial_attention_kernel(%arg0: i32, %arg1: i32, %arg2: memref<1x4x16x16xf32, #tpu.memory_space<vmem>>, %arg3: memref<98xf32, #tpu.memory_space<smem>>, %arg4: memref<1x16x16xf32, #tpu.memory_space<vmem>>, %arg5: memref<2x16x16xf32, #tpu.memory_space<vmem>>, %arg6: memref<2x22x22xf32, #tpu.memory_space<vmem>>) attributes {dimension_semantics = [#tpu.dimension_semantics<parallel>, #tpu.dimension_semantics<arbitrary>], iteration_bounds = array<i64: 2, 1>, scalar_prefetch = 0 : i64, scratch_operands = 2 : i64, tpu.core_type = #tpu.core_type<tc>, window_params = [{transform_indices = @transform_0, window_bounds = array<i64: 1, 4, 16, 16>}, {transform_indices = @transform_1, window_bounds = array<i64: 98>}, {transform_indices = @transform_2, window_bounds = array<i64: 1, 16, 16>}]} {
    %c0 = arith.constant 0 : index
    %c0_0 = arith.constant 0 : index
    %c0_1 = arith.constant 0 : index
    %c0_2 = arith.constant 0 : index
    %0 = vector.load %arg2[%c0, %c0_0, %c0_1, %c0_2] : memref<1x4x16x16xf32, #tpu.memory_space<vmem>>, vector<1x1x16x16xf32>
    %1 = vector.shape_cast %0 : vector<1x1x16x16xf32> to vector<16x16xf32>
    %c0_3 = arith.constant 0 : index
    %c1 = arith.constant 1 : index
    %c0_4 = arith.constant 0 : index
    %c0_5 = arith.constant 0 : index
    %2 = vector.load %arg2[%c0_3, %c1, %c0_4, %c0_5] : memref<1x4x16x16xf32, #tpu.memory_space<vmem>>, vector<1x1x16x16xf32>
    %3 = vector.shape_cast %2 : vector<1x1x16x16xf32> to vector<16x16xf32>
    %4 = arith.addf %1, %3 : vector<16x16xf32>
    %5 = arith.maximumf %1, %3 : vector<16x16xf32>
    %c0_6 = arith.constant 0 : index
    %c2 = arith.constant 2 : index
    %c0_7 = arith.constant 0 : index
    %c0_8 = arith.constant 0 : index
    %6 = vector.load %arg2[%c0_6, %c2, %c0_7, %c0_8] : memref<1x4x16x16xf32, #tpu.memory_space<vmem>>, vector<1x1x16x16xf32>
    %7 = vector.shape_cast %6 : vector<1x1x16x16xf32> to vector<16x16xf32>
    %8 = arith.addf %4, %7 : vector<16x16xf32>
    %9 = arith.maximumf %5, %7 : vector<16x16xf32>
    %c0_9 = arith.constant 0 : index
    %c3 = arith.constant 3 : index
    %c0_10 = arith.constant 0 : index
    %c0_11 = arith.constant 0 : index
    %10 = vector.load %arg2[%c0_9, %c3, %c0_10, %c0_11] : memref<1x4x16x16xf32, #tpu.memory_space<vmem>>, vector<1x1x16x16xf32>
    %11 = vector.shape_cast %10 : vector<1x1x16x16xf32> to vector<16x16xf32>
    %12 = arith.addf %8, %11 : vector<16x16xf32>
    %13 = arith.maximumf %9, %11 : vector<16x16xf32>
    %c0_i32 = arith.constant 0 : i32
    %14 = arith.cmpi eq, %arg1, %c0_i32 : i32
    %15 = arith.extui %14 : i1 to i32
    %c0_i32_12 = arith.constant 0 : i32
    %16 = arith.cmpi ne, %15, %c0_i32_12 : i32
    scf.if %16 {
      %c0_17 = arith.constant 0 : index
      %c0_18 = arith.constant 0 : index
      %c0_19 = arith.constant 0 : index
      %23 = vector.load %arg5[%c0_17, %c0_18, %c0_19] : memref<2x16x16xf32, #tpu.memory_space<vmem>>, vector<1x16x16xf32>
      %24 = vector.shape_cast %23 : vector<1x16x16xf32> to vector<16x16xf32>
      %25 = vector.shape_cast %12 : vector<16x16xf32> to vector<1x16x16xf32>
      tpu.vector_store %arg5[%c0_17, %c0_18, %c0_19], %25 {strides = array<i32>} : memref<2x16x16xf32, #tpu.memory_space<vmem>>, vector<1x16x16xf32>,
      %c1_20 = arith.constant 1 : index
      %c0_21 = arith.constant 0 : index
      %c0_22 = arith.constant 0 : index
      %26 = vector.load %arg5[%c1_20, %c0_21, %c0_22] : memref<2x16x16xf32, #tpu.memory_space<vmem>>, vector<1x16x16xf32>
      %27 = vector.shape_cast %26 : vector<1x16x16xf32> to vector<16x16xf32>
      %28 = vector.shape_cast %13 : vector<16x16xf32> to vector<1x16x16xf32>
      tpu.vector_store %arg5[%c1_20, %c0_21, %c0_22], %28 {strides = array<i32>} : memref<2x16x16xf32, #tpu.memory_space<vmem>>, vector<1x16x16xf32>,
    } else {
    }
    %c0_i32_13 = arith.constant 0 : i32
    %17 = arith.cmpi sgt, %arg1, %c0_i32_13 : i32
    %18 = arith.extui %17 : i1 to i32
    %c0_i32_14 = arith.constant 0 : i32
    %19 = arith.cmpi ne, %18, %c0_i32_14 : i32
    scf.if %19 {
      %c0_17 = arith.constant 0 : index
      %c0_18 = arith.constant 0 : index
      %c0_19 = arith.constant 0 : index
      %23 = vector.load %arg5[%c0_17, %c0_18, %c0_19] : memref<2x16x16xf32, #tpu.memory_space<vmem>>, vector<1x16x16xf32>
      %24 = vector.shape_cast %23 : vector<1x16x16xf32> to vector<16x16xf32>
      %25 = arith.addf %24, %12 : vector<16x16xf32>
      %c0_20 = arith.constant 0 : index
      %c0_21 = arith.constant 0 : index
      %c0_22 = arith.constant 0 : index
      %26 = vector.load %arg5[%c0_20, %c0_21, %c0_22] : memref<2x16x16xf32, #tpu.memory_space<vmem>>, vector<1x16x16xf32>
      %27 = vector.shape_cast %26 : vector<1x16x16xf32> to vector<16x16xf32>
      %28 = vector.shape_cast %25 : vector<16x16xf32> to vector<1x16x16xf32>
      tpu.vector_store %arg5[%c0_20, %c0_21, %c0_22], %28 {strides = array<i32>} : memref<2x16x16xf32, #tpu.memory_space<vmem>>, vector<1x16x16xf32>,
      %c1_23 = arith.constant 1 : index
      %c0_24 = arith.constant 0 : index
      %c0_25 = arith.constant 0 : index
      %29 = vector.load %arg5[%c1_23, %c0_24, %c0_25] : memref<2x16x16xf32, #tpu.memory_space<vmem>>, vector<1x16x16xf32>
      %30 = vector.shape_cast %29 : vector<1x16x16xf32> to vector<16x16xf32>
      %31 = arith.maximumf %30, %13 : vector<16x16xf32>
      %c1_26 = arith.constant 1 : index
      %c0_27 = arith.constant 0 : index
      %c0_28 = arith.constant 0 : index
      %32 = vector.load %arg5[%c1_26, %c0_27, %c0_28] : memref<2x16x16xf32, #tpu.memory_space<vmem>>, vector<1x16x16xf32>
      %33 = vector.shape_cast %32 : vector<1x16x16xf32> to vector<16x16xf32>
      %34 = vector.shape_cast %31 : vector<16x16xf32> to vector<1x16x16xf32>
      tpu.vector_store %arg5[%c1_26, %c0_27, %c0_28], %34 {strides = array<i32>} : memref<2x16x16xf32, #tpu.memory_space<vmem>>, vector<1x16x16xf32>,
    } else {
    }
    %c0_i32_15 = arith.constant 0 : i32
    %20 = arith.cmpi eq, %arg1, %c0_i32_15 : i32
    %21 = arith.extui %20 : i1 to i32
    %c0_i32_16 = arith.constant 0 : i32
    %22 = arith.cmpi ne, %21, %c0_i32_16 : i32
    scf.if %22 {
      %cst = arith.constant 0.000000e+00 : f32
      %23 = vector.broadcast %cst : f32 to vector<2x22x22xf32>
      %c0_17 = arith.constant 0 : index
      %c0_18 = arith.constant 0 : index
      %c0_19 = arith.constant 0 : index
      %24 = vector.load %arg6[%c0_17, %c0_18, %c0_19] : memref<2x22x22xf32, #tpu.memory_space<vmem>>, vector<2x22x22xf32>
      tpu.vector_store %arg6[%c0_17, %c0_18, %c0_19], %23 {strides = array<i32>} : memref<2x22x22xf32, #tpu.memory_space<vmem>>, vector<2x22x22xf32>,
      %c0_20 = arith.constant 0 : index
      %c0_21 = arith.constant 0 : index
      %c0_22 = arith.constant 0 : index
      %25 = vector.load %arg5[%c0_20, %c0_21, %c0_22] : memref<2x16x16xf32, #tpu.memory_space<vmem>>, vector<2x16x16xf32>
      %c0_23 = arith.constant 0 : index
      %c3_24 = arith.constant 3 : index
      %c3_25 = arith.constant 3 : index
      %26 = vector.load %arg6[%c0_23, %c3_24, %c3_25] : memref<2x22x22xf32, #tpu.memory_space<vmem>>, vector<2x16x16xf32>
      tpu.vector_store %arg6[%c0_23, %c3_24, %c3_25], %25 {strides = array<i32>} : memref<2x22x22xf32, #tpu.memory_space<vmem>>, vector<2x16x16xf32>,
      %c0_26 = arith.constant 0 : index
      %c0_27 = arith.constant 0 : index
      %c0_28 = arith.constant 0 : index
      %27 = vector.load %arg6[%c0_26, %c0_27, %c0_28] : memref<2x22x22xf32, #tpu.memory_space<vmem>>, vector<2x22x22xf32>
      %c0_29 = arith.constant 0 : index
      %28 = memref.load %arg3[%c0_29] : memref<98xf32, #tpu.memory_space<smem>>
      %c1_30 = arith.constant 1 : index
      %29 = memref.load %arg3[%c1_30] : memref<98xf32, #tpu.memory_space<smem>>
      %c2_31 = arith.constant 2 : index
      %30 = memref.load %arg3[%c2_31] : memref<98xf32, #tpu.memory_space<smem>>
      %c3_32 = arith.constant 3 : index
      %31 = memref.load %arg3[%c3_32] : memref<98xf32, #tpu.memory_space<smem>>
      %c4 = arith.constant 4 : index
      %32 = memref.load %arg3[%c4] : memref<98xf32, #tpu.memory_space<smem>>
      %c5 = arith.constant 5 : index
      %33 = memref.load %arg3[%c5] : memref<98xf32, #tpu.memory_space<smem>>
      %c6 = arith.constant 6 : index
      %34 = memref.load %arg3[%c6] : memref<98xf32, #tpu.memory_space<smem>>
      %c7 = arith.constant 7 : index
      %35 = memref.load %arg3[%c7] : memref<98xf32, #tpu.memory_space<smem>>
      %c8 = arith.constant 8 : index
      %36 = memref.load %arg3[%c8] : memref<98xf32, #tpu.memory_space<smem>>
      %c9 = arith.constant 9 : index
      %37 = memref.load %arg3[%c9] : memref<98xf32, #tpu.memory_space<smem>>
      %c10 = arith.constant 10 : index
      %38 = memref.load %arg3[%c10] : memref<98xf32, #tpu.memory_space<smem>>
      %c11 = arith.constant 11 : index
      %39 = memref.load %arg3[%c11] : memref<98xf32, #tpu.memory_space<smem>>
      %c12 = arith.constant 12 : index
      %40 = memref.load %arg3[%c12] : memref<98xf32, #tpu.memory_space<smem>>
      %c13 = arith.constant 13 : index
      %41 = memref.load %arg3[%c13] : memref<98xf32, #tpu.memory_space<smem>>
      %c14 = arith.constant 14 : index
      %42 = memref.load %arg3[%c14] : memref<98xf32, #tpu.memory_space<smem>>
      %c15 = arith.constant 15 : index
      %43 = memref.load %arg3[%c15] : memref<98xf32, #tpu.memory_space<smem>>
      %c16 = arith.constant 16 : index
      %44 = memref.load %arg3[%c16] : memref<98xf32, #tpu.memory_space<smem>>
      %c17 = arith.constant 17 : index
      %45 = memref.load %arg3[%c17] : memref<98xf32, #tpu.memory_space<smem>>
      %c18 = arith.constant 18 : index
      %46 = memref.load %arg3[%c18] : memref<98xf32, #tpu.memory_space<smem>>
      %c19 = arith.constant 19 : index
      %47 = memref.load %arg3[%c19] : memref<98xf32, #tpu.memory_space<smem>>
      %c20 = arith.constant 20 : index
      %48 = memref.load %arg3[%c20] : memref<98xf32, #tpu.memory_space<smem>>
      %c21 = arith.constant 21 : index
      %49 = memref.load %arg3[%c21] : memref<98xf32, #tpu.memory_space<smem>>
      %c22 = arith.constant 22 : index
      %50 = memref.load %arg3[%c22] : memref<98xf32, #tpu.memory_space<smem>>
      %c23 = arith.constant 23 : index
      %51 = memref.load %arg3[%c23] : memref<98xf32, #tpu.memory_space<smem>>
      %c24 = arith.constant 24 : index
      %52 = memref.load %arg3[%c24] : memref<98xf32, #tpu.memory_space<smem>>
      %c25 = arith.constant 25 : index
      %53 = memref.load %arg3[%c25] : memref<98xf32, #tpu.memory_space<smem>>
      %c26 = arith.constant 26 : index
      %54 = memref.load %arg3[%c26] : memref<98xf32, #tpu.memory_space<smem>>
      %c27 = arith.constant 27 : index
      %55 = memref.load %arg3[%c27] : memref<98xf32, #tpu.memory_space<smem>>
      %c28 = arith.constant 28 : index
      %56 = memref.load %arg3[%c28] : memref<98xf32, #tpu.memory_space<smem>>
      %c29 = arith.constant 29 : index
      %57 = memref.load %arg3[%c29] : memref<98xf32, #tpu.memory_space<smem>>
      %c30 = arith.constant 30 : index
      %58 = memref.load %arg3[%c30] : memref<98xf32, #tpu.memory_space<smem>>
      %c31 = arith.constant 31 : index
      %59 = memref.load %arg3[%c31] : memref<98xf32, #tpu.memory_space<smem>>
      %c32 = arith.constant 32 : index
      %60 = memref.load %arg3[%c32] : memref<98xf32, #tpu.memory_space<smem>>
      %c33 = arith.constant 33 : index
      %61 = memref.load %arg3[%c33] : memref<98xf32, #tpu.memory_space<smem>>
      %c34 = arith.constant 34 : index
      %62 = memref.load %arg3[%c34] : memref<98xf32, #tpu.memory_space<smem>>
      %c35 = arith.constant 35 : index
      %63 = memref.load %arg3[%c35] : memref<98xf32, #tpu.memory_space<smem>>
      %c36 = arith.constant 36 : index
      %64 = memref.load %arg3[%c36] : memref<98xf32, #tpu.memory_space<smem>>
      %c37 = arith.constant 37 : index
      %65 = memref.load %arg3[%c37] : memref<98xf32, #tpu.memory_space<smem>>
      %c38 = arith.constant 38 : index
      %66 = memref.load %arg3[%c38] : memref<98xf32, #tpu.memory_space<smem>>
      %c39 = arith.constant 39 : index
      %67 = memref.load %arg3[%c39] : memref<98xf32, #tpu.memory_space<smem>>
      %c40 = arith.constant 40 : index
      %68 = memref.load %arg3[%c40] : memref<98xf32, #tpu.memory_space<smem>>
      %c41 = arith.constant 41 : index
      %69 = memref.load %arg3[%c41] : memref<98xf32, #tpu.memory_space<smem>>
      %c42 = arith.constant 42 : index
      %70 = memref.load %arg3[%c42] : memref<98xf32, #tpu.memory_space<smem>>
      %c43 = arith.constant 43 : index
      %71 = memref.load %arg3[%c43] : memref<98xf32, #tpu.memory_space<smem>>
      %c44 = arith.constant 44 : index
      %72 = memref.load %arg3[%c44] : memref<98xf32, #tpu.memory_space<smem>>
      %c45 = arith.constant 45 : index
      %73 = memref.load %arg3[%c45] : memref<98xf32, #tpu.memory_space<smem>>
      %c46 = arith.constant 46 : index
      %74 = memref.load %arg3[%c46] : memref<98xf32, #tpu.memory_space<smem>>
      %c47 = arith.constant 47 : index
      %75 = memref.load %arg3[%c47] : memref<98xf32, #tpu.memory_space<smem>>
      %c48 = arith.constant 48 : index
      %76 = memref.load %arg3[%c48] : memref<98xf32, #tpu.memory_space<smem>>
      %c49 = arith.constant 49 : index
      %77 = memref.load %arg3[%c49] : memref<98xf32, #tpu.memory_space<smem>>
      %c50 = arith.constant 50 : index
      %78 = memref.load %arg3[%c50] : memref<98xf32, #tpu.memory_space<smem>>
      %c51 = arith.constant 51 : index
      %79 = memref.load %arg3[%c51] : memref<98xf32, #tpu.memory_space<smem>>
      %c52 = arith.constant 52 : index
      %80 = memref.load %arg3[%c52] : memref<98xf32, #tpu.memory_space<smem>>
      %c53 = arith.constant 53 : index
      %81 = memref.load %arg3[%c53] : memref<98xf32, #tpu.memory_space<smem>>
      %c54 = arith.constant 54 : index
      %82 = memref.load %arg3[%c54] : memref<98xf32, #tpu.memory_space<smem>>
      %c55 = arith.constant 55 : index
      %83 = memref.load %arg3[%c55] : memref<98xf32, #tpu.memory_space<smem>>
      %c56 = arith.constant 56 : index
      %84 = memref.load %arg3[%c56] : memref<98xf32, #tpu.memory_space<smem>>
      %c57 = arith.constant 57 : index
      %85 = memref.load %arg3[%c57] : memref<98xf32, #tpu.memory_space<smem>>
      %c58 = arith.constant 58 : index
      %86 = memref.load %arg3[%c58] : memref<98xf32, #tpu.memory_space<smem>>
      %c59 = arith.constant 59 : index
      %87 = memref.load %arg3[%c59] : memref<98xf32, #tpu.memory_space<smem>>
      %c60 = arith.constant 60 : index
      %88 = memref.load %arg3[%c60] : memref<98xf32, #tpu.memory_space<smem>>
      %c61 = arith.constant 61 : index
      %89 = memref.load %arg3[%c61] : memref<98xf32, #tpu.memory_space<smem>>
      %c62 = arith.constant 62 : index
      %90 = memref.load %arg3[%c62] : memref<98xf32, #tpu.memory_space<smem>>
      %c63 = arith.constant 63 : index
      %91 = memref.load %arg3[%c63] : memref<98xf32, #tpu.memory_space<smem>>
      %c64 = arith.constant 64 : index
      %92 = memref.load %arg3[%c64] : memref<98xf32, #tpu.memory_space<smem>>
      %c65 = arith.constant 65 : index
      %93 = memref.load %arg3[%c65] : memref<98xf32, #tpu.memory_space<smem>>
      %c66 = arith.constant 66 : index
      %94 = memref.load %arg3[%c66] : memref<98xf32, #tpu.memory_space<smem>>
      %c67 = arith.constant 67 : index
      %95 = memref.load %arg3[%c67] : memref<98xf32, #tpu.memory_space<smem>>
      %c68 = arith.constant 68 : index
      %96 = memref.load %arg3[%c68] : memref<98xf32, #tpu.memory_space<smem>>
      %c69 = arith.constant 69 : index
      %97 = memref.load %arg3[%c69] : memref<98xf32, #tpu.memory_space<smem>>
      %c70 = arith.constant 70 : index
      %98 = memref.load %arg3[%c70] : memref<98xf32, #tpu.memory_space<smem>>
      %c71 = arith.constant 71 : index
      %99 = memref.load %arg3[%c71] : memref<98xf32, #tpu.memory_space<smem>>
      %c72 = arith.constant 72 : index
      %100 = memref.load %arg3[%c72] : memref<98xf32, #tpu.memory_space<smem>>
      %c73 = arith.constant 73 : index
      %101 = memref.load %arg3[%c73] : memref<98xf32, #tpu.memory_space<smem>>
      %c74 = arith.constant 74 : index
      %102 = memref.load %arg3[%c74] : memref<98xf32, #tpu.memory_space<smem>>
      %c75 = arith.constant 75 : index
      %103 = memref.load %arg3[%c75] : memref<98xf32, #tpu.memory_space<smem>>
      %c76 = arith.constant 76 : index
      %104 = memref.load %arg3[%c76] : memref<98xf32, #tpu.memory_space<smem>>
      %c77 = arith.constant 77 : index
      %105 = memref.load %arg3[%c77] : memref<98xf32, #tpu.memory_space<smem>>
      %c78 = arith.constant 78 : index
      %106 = memref.load %arg3[%c78] : memref<98xf32, #tpu.memory_space<smem>>
      %c79 = arith.constant 79 : index
      %107 = memref.load %arg3[%c79] : memref<98xf32, #tpu.memory_space<smem>>
      %c80 = arith.constant 80 : index
      %108 = memref.load %arg3[%c80] : memref<98xf32, #tpu.memory_space<smem>>
      %c81 = arith.constant 81 : index
      %109 = memref.load %arg3[%c81] : memref<98xf32, #tpu.memory_space<smem>>
      %c82 = arith.constant 82 : index
      %110 = memref.load %arg3[%c82] : memref<98xf32, #tpu.memory_space<smem>>
      %c83 = arith.constant 83 : index
      %111 = memref.load %arg3[%c83] : memref<98xf32, #tpu.memory_space<smem>>
      %c84 = arith.constant 84 : index
      %112 = memref.load %arg3[%c84] : memref<98xf32, #tpu.memory_space<smem>>
      %c85 = arith.constant 85 : index
      %113 = memref.load %arg3[%c85] : memref<98xf32, #tpu.memory_space<smem>>
      %c86 = arith.constant 86 : index
      %114 = memref.load %arg3[%c86] : memref<98xf32, #tpu.memory_space<smem>>
      %c87 = arith.constant 87 : index
      %115 = memref.load %arg3[%c87] : memref<98xf32, #tpu.memory_space<smem>>
      %c88 = arith.constant 88 : index
      %116 = memref.load %arg3[%c88] : memref<98xf32, #tpu.memory_space<smem>>
      %c89 = arith.constant 89 : index
      %117 = memref.load %arg3[%c89] : memref<98xf32, #tpu.memory_space<smem>>
      %c90 = arith.constant 90 : index
      %118 = memref.load %arg3[%c90] : memref<98xf32, #tpu.memory_space<smem>>
      %c91 = arith.constant 91 : index
      %119 = memref.load %arg3[%c91] : memref<98xf32, #tpu.memory_space<smem>>
      %c92 = arith.constant 92 : index
      %120 = memref.load %arg3[%c92] : memref<98xf32, #tpu.memory_space<smem>>
      %c93 = arith.constant 93 : index
      %121 = memref.load %arg3[%c93] : memref<98xf32, #tpu.memory_space<smem>>
      %c94 = arith.constant 94 : index
      %122 = memref.load %arg3[%c94] : memref<98xf32, #tpu.memory_space<smem>>
      %c95 = arith.constant 95 : index
      %123 = memref.load %arg3[%c95] : memref<98xf32, #tpu.memory_space<smem>>
      %c96 = arith.constant 96 : index
      %124 = memref.load %arg3[%c96] : memref<98xf32, #tpu.memory_space<smem>>
      %c97 = arith.constant 97 : index
      %125 = memref.load %arg3[%c97] : memref<98xf32, #tpu.memory_space<smem>>
      %cst_33 = arith.constant 0.000000e+00 : f32
      %126 = vector.broadcast %cst_33 : f32 to vector<16x16xf32>
      %cst_34 = arith.constant 0.000000e+00 : f32
      %127 = vector.broadcast %cst_34 : f32 to vector<16x16xf32>
      %cst_35 = arith.constant 0.000000e+00 : f32
      %128 = vector.broadcast %cst_35 : f32 to vector<16x16xf32>
      %cst_36 = arith.constant 0.000000e+00 : f32
      %129 = vector.broadcast %cst_36 : f32 to vector<16x16xf32>
      %130 = vector.extract_strided_slice %27 {offsets = [0, 0, 0], sizes = [1, 16, 16], strides = [1, 1, 1]} : vector<2x22x22xf32> to vector<1x16x16xf32>
      %131 = vector.shape_cast %130 : vector<1x16x16xf32> to vector<16x16xf32>
      %132 = vector.broadcast %28 : f32 to vector<16x16xf32>
      %133 = arith.mulf %132, %131 : vector<16x16xf32>
      %134 = arith.addf %126, %133 : vector<16x16xf32>
      %135 = vector.extract_strided_slice %27 {offsets = [0, 0, 1], sizes = [1, 16, 16], strides = [1, 1, 1]} : vector<2x22x22xf32> to vector<1x16x16xf32>
      %136 = vector.shape_cast %135 : vector<1x16x16xf32> to vector<16x16xf32>
      %137 = vector.broadcast %29 : f32 to vector<16x16xf32>
      %138 = arith.mulf %137, %136 : vector<16x16xf32>
      %139 = arith.addf %127, %138 : vector<16x16xf32>
      %140 = vector.extract_strided_slice %27 {offsets = [0, 0, 2], sizes = [1, 16, 16], strides = [1, 1, 1]} : vector<2x22x22xf32> to vector<1x16x16xf32>
      %141 = vector.shape_cast %140 : vector<1x16x16xf32> to vector<16x16xf32>
      %142 = vector.broadcast %30 : f32 to vector<16x16xf32>
      %143 = arith.mulf %142, %141 : vector<16x16xf32>
      %144 = arith.addf %128, %143 : vector<16x16xf32>
      %145 = vector.extract_strided_slice %27 {offsets = [0, 0, 3], sizes = [1, 16, 16], strides = [1, 1, 1]} : vector<2x22x22xf32> to vector<1x16x16xf32>
      %146 = vector.shape_cast %145 : vector<1x16x16xf32> to vector<16x16xf32>
      %147 = vector.broadcast %31 : f32 to vector<16x16xf32>
      %148 = arith.mulf %147, %146 : vector<16x16xf32>
      %149 = arith.addf %129, %148 : vector<16x16xf32>
      %150 = vector.extract_strided_slice %27 {offsets = [0, 0, 4], sizes = [1, 16, 16], strides = [1, 1, 1]} : vector<2x22x22xf32> to vector<1x16x16xf32>
      %151 = vector.shape_cast %150 : vector<1x16x16xf32> to vector<16x16xf32>
      %152 = vector.broadcast %32 : f32 to vector<16x16xf32>
      %153 = arith.mulf %152, %151 : vector<16x16xf32>
      %154 = arith.addf %134, %153 : vector<16x16xf32>
      %155 = vector.extract_strided_slice %27 {offsets = [0, 0, 5], sizes = [1, 16, 16], strides = [1, 1, 1]} : vector<2x22x22xf32> to vector<1x16x16xf32>
      %156 = vector.shape_cast %155 : vector<1x16x16xf32> to vector<16x16xf32>
      %157 = vector.broadcast %33 : f32 to vector<16x16xf32>
      %158 = arith.mulf %157, %156 : vector<16x16xf32>
      %159 = arith.addf %139, %158 : vector<16x16xf32>
      %160 = vector.extract_strided_slice %27 {offsets = [0, 0, 6], sizes = [1, 16, 16], strides = [1, 1, 1]} : vector<2x22x22xf32> to vector<1x16x16xf32>
      %161 = vector.shape_cast %160 : vector<1x16x16xf32> to vector<16x16xf32>
      %162 = vector.broadcast %34 : f32 to vector<16x16xf32>
      %163 = arith.mulf %162, %161 : vector<16x16xf32>
      %164 = arith.addf %144, %163 : vector<16x16xf32>
      %165 = vector.extract_strided_slice %27 {offsets = [0, 1, 0], sizes = [1, 16, 16], strides = [1, 1, 1]} : vector<2x22x22xf32> to vector<1x16x16xf32>
      %166 = vector.shape_cast %165 : vector<1x16x16xf32> to vector<16x16xf32>
      %167 = vector.broadcast %35 : f32 to vector<16x16xf32>
      %168 = arith.mulf %167, %166 : vector<16x16xf32>
      %169 = arith.addf %149, %168 : vector<16x16xf32>
      %170 = vector.extract_strided_slice %27 {offsets = [0, 1, 1], sizes = [1, 16, 16], strides = [1, 1, 1]} : vector<2x22x22xf32> to vector<1x16x16xf32>
      %171 = vector.shape_cast %170 : vector<1x16x16xf32> to vector<16x16xf32>
      %172 = vector.broadcast %36 : f32 to vector<16x16xf32>
      %173 = arith.mulf %172, %171 : vector<16x16xf32>
      %174 = arith.addf %154, %173 : vector<16x16xf32>
      %175 = vector.extract_strided_slice %27 {offsets = [0, 1, 2], sizes = [1, 16, 16], strides = [1, 1, 1]} : vector<2x22x22xf32> to vector<1x16x16xf32>
      %176 = vector.shape_cast %175 : vector<1x16x16xf32> to vector<16x16xf32>
      %177 = vector.broadcast %37 : f32 to vector<16x16xf32>
      %178 = arith.mulf %177, %176 : vector<16x16xf32>
      %179 = arith.addf %159, %178 : vector<16x16xf32>
      %180 = vector.extract_strided_slice %27 {offsets = [0, 1, 3], sizes = [1, 16, 16], strides = [1, 1, 1]} : vector<2x22x22xf32> to vector<1x16x16xf32>
      %181 = vector.shape_cast %180 : vector<1x16x16xf32> to vector<16x16xf32>
      %182 = vector.broadcast %38 : f32 to vector<16x16xf32>
      %183 = arith.mulf %182, %181 : vector<16x16xf32>
      %184 = arith.addf %164, %183 : vector<16x16xf32>
      %185 = vector.extract_strided_slice %27 {offsets = [0, 1, 4], sizes = [1, 16, 16], strides = [1, 1, 1]} : vector<2x22x22xf32> to vector<1x16x16xf32>
      %186 = vector.shape_cast %185 : vector<1x16x16xf32> to vector<16x16xf32>
      %187 = vector.broadcast %39 : f32 to vector<16x16xf32>
      %188 = arith.mulf %187, %186 : vector<16x16xf32>
      %189 = arith.addf %169, %188 : vector<16x16xf32>
      %190 = vector.extract_strided_slice %27 {offsets = [0, 1, 5], sizes = [1, 16, 16], strides = [1, 1, 1]} : vector<2x22x22xf32> to vector<1x16x16xf32>
      %191 = vector.shape_cast %190 : vector<1x16x16xf32> to vector<16x16xf32>
      %192 = vector.broadcast %40 : f32 to vector<16x16xf32>
      %193 = arith.mulf %192, %191 : vector<16x16xf32>
      %194 = arith.addf %174, %193 : vector<16x16xf32>
      %195 = vector.extract_strided_slice %27 {offsets = [0, 1, 6], sizes = [1, 16, 16], strides = [1, 1, 1]} : vector<2x22x22xf32> to vector<1x16x16xf32>
      %196 = vector.shape_cast %195 : vector<1x16x16xf32> to vector<16x16xf32>
      %197 = vector.broadcast %41 : f32 to vector<16x16xf32>
      %198 = arith.mulf %197, %196 : vector<16x16xf32>
      %199 = arith.addf %179, %198 : vector<16x16xf32>
      %200 = vector.extract_strided_slice %27 {offsets = [0, 2, 0], sizes = [1, 16, 16], strides = [1, 1, 1]} : vector<2x22x22xf32> to vector<1x16x16xf32>
      %201 = vector.shape_cast %200 : vector<1x16x16xf32> to vector<16x16xf32>
      %202 = vector.broadcast %42 : f32 to vector<16x16xf32>
      %203 = arith.mulf %202, %201 : vector<16x16xf32>
      %204 = arith.addf %184, %203 : vector<16x16xf32>
      %205 = vector.extract_strided_slice %27 {offsets = [0, 2, 1], sizes = [1, 16, 16], strides = [1, 1, 1]} : vector<2x22x22xf32> to vector<1x16x16xf32>
      %206 = vector.shape_cast %205 : vector<1x16x16xf32> to vector<16x16xf32>
      %207 = vector.broadcast %43 : f32 to vector<16x16xf32>
      %208 = arith.mulf %207, %206 : vector<16x16xf32>
      %209 = arith.addf %189, %208 : vector<16x16xf32>
      %210 = vector.extract_strided_slice %27 {offsets = [0, 2, 2], sizes = [1, 16, 16], strides = [1, 1, 1]} : vector<2x22x22xf32> to vector<1x16x16xf32>
      %211 = vector.shape_cast %210 : vector<1x16x16xf32> to vector<16x16xf32>
      %212 = vector.broadcast %44 : f32 to vector<16x16xf32>
      %213 = arith.mulf %212, %211 : vector<16x16xf32>
      %214 = arith.addf %194, %213 : vector<16x16xf32>
      %215 = vector.extract_strided_slice %27 {offsets = [0, 2, 3], sizes = [1, 16, 16], strides = [1, 1, 1]} : vector<2x22x22xf32> to vector<1x16x16xf32>
      %216 = vector.shape_cast %215 : vector<1x16x16xf32> to vector<16x16xf32>
      %217 = vector.broadcast %45 : f32 to vector<16x16xf32>
      %218 = arith.mulf %217, %216 : vector<16x16xf32>
      %219 = arith.addf %199, %218 : vector<16x16xf32>
      %220 = vector.extract_strided_slice %27 {offsets = [0, 2, 4], sizes = [1, 16, 16], strides = [1, 1, 1]} : vector<2x22x22xf32> to vector<1x16x16xf32>
      %221 = vector.shape_cast %220 : vector<1x16x16xf32> to vector<16x16xf32>
      %222 = vector.broadcast %46 : f32 to vector<16x16xf32>
      %223 = arith.mulf %222, %221 : vector<16x16xf32>
      %224 = arith.addf %204, %223 : vector<16x16xf32>
      %225 = vector.extract_strided_slice %27 {offsets = [0, 2, 5], sizes = [1, 16, 16], strides = [1, 1, 1]} : vector<2x22x22xf32> to vector<1x16x16xf32>
      %226 = vector.shape_cast %225 : vector<1x16x16xf32> to vector<16x16xf32>
      %227 = vector.broadcast %47 : f32 to vector<16x16xf32>
      %228 = arith.mulf %227, %226 : vector<16x16xf32>
      %229 = arith.addf %209, %228 : vector<16x16xf32>
      %230 = vector.extract_strided_slice %27 {offsets = [0, 2, 6], sizes = [1, 16, 16], strides = [1, 1, 1]} : vector<2x22x22xf32> to vector<1x16x16xf32>
      %231 = vector.shape_cast %230 : vector<1x16x16xf32> to vector<16x16xf32>
      %232 = vector.broadcast %48 : f32 to vector<16x16xf32>
      %233 = arith.mulf %232, %231 : vector<16x16xf32>
      %234 = arith.addf %214, %233 : vector<16x16xf32>
      %235 = vector.extract_strided_slice %27 {offsets = [0, 3, 0], sizes = [1, 16, 16], strides = [1, 1, 1]} : vector<2x22x22xf32> to vector<1x16x16xf32>
      %236 = vector.shape_cast %235 : vector<1x16x16xf32> to vector<16x16xf32>
      %237 = vector.broadcast %49 : f32 to vector<16x16xf32>
      %238 = arith.mulf %237, %236 : vector<16x16xf32>
      %239 = arith.addf %219, %238 : vector<16x16xf32>
      %240 = vector.extract_strided_slice %27 {offsets = [0, 3, 1], sizes = [1, 16, 16], strides = [1, 1, 1]} : vector<2x22x22xf32> to vector<1x16x16xf32>
      %241 = vector.shape_cast %240 : vector<1x16x16xf32> to vector<16x16xf32>
      %242 = vector.broadcast %50 : f32 to vector<16x16xf32>
      %243 = arith.mulf %242, %241 : vector<16x16xf32>
      %244 = arith.addf %224, %243 : vector<16x16xf32>
      %245 = vector.extract_strided_slice %27 {offsets = [0, 3, 2], sizes = [1, 16, 16], strides = [1, 1, 1]} : vector<2x22x22xf32> to vector<1x16x16xf32>
      %246 = vector.shape_cast %245 : vector<1x16x16xf32> to vector<16x16xf32>
      %247 = vector.broadcast %51 : f32 to vector<16x16xf32>
      %248 = arith.mulf %247, %246 : vector<16x16xf32>
      %249 = arith.addf %229, %248 : vector<16x16xf32>
      %250 = vector.extract_strided_slice %27 {offsets = [0, 3, 3], sizes = [1, 16, 16], strides = [1, 1, 1]} : vector<2x22x22xf32> to vector<1x16x16xf32>
      %251 = vector.shape_cast %250 : vector<1x16x16xf32> to vector<16x16xf32>
      %252 = vector.broadcast %52 : f32 to vector<16x16xf32>
      %253 = arith.mulf %252, %251 : vector<16x16xf32>
      %254 = arith.addf %234, %253 : vector<16x16xf32>
      %255 = vector.extract_strided_slice %27 {offsets = [0, 3, 4], sizes = [1, 16, 16], strides = [1, 1, 1]} : vector<2x22x22xf32> to vector<1x16x16xf32>
      %256 = vector.shape_cast %255 : vector<1x16x16xf32> to vector<16x16xf32>
      %257 = vector.broadcast %53 : f32 to vector<16x16xf32>
      %258 = arith.mulf %257, %256 : vector<16x16xf32>
      %259 = arith.addf %239, %258 : vector<16x16xf32>
      %260 = vector.extract_strided_slice %27 {offsets = [0, 3, 5], sizes = [1, 16, 16], strides = [1, 1, 1]} : vector<2x22x22xf32> to vector<1x16x16xf32>
      %261 = vector.shape_cast %260 : vector<1x16x16xf32> to vector<16x16xf32>
      %262 = vector.broadcast %54 : f32 to vector<16x16xf32>
      %263 = arith.mulf %262, %261 : vector<16x16xf32>
      %264 = arith.addf %244, %263 : vector<16x16xf32>
      %265 = vector.extract_strided_slice %27 {offsets = [0, 3, 6], sizes = [1, 16, 16], strides = [1, 1, 1]} : vector<2x22x22xf32> to vector<1x16x16xf32>
      %266 = vector.shape_cast %265 : vector<1x16x16xf32> to vector<16x16xf32>
      %267 = vector.broadcast %55 : f32 to vector<16x16xf32>
      %268 = arith.mulf %267, %266 : vector<16x16xf32>
      %269 = arith.addf %249, %268 : vector<16x16xf32>
      %270 = vector.extract_strided_slice %27 {offsets = [0, 4, 0], sizes = [1, 16, 16], strides = [1, 1, 1]} : vector<2x22x22xf32> to vector<1x16x16xf32>
      %271 = vector.shape_cast %270 : vector<1x16x16xf32> to vector<16x16xf32>
      %272 = vector.broadcast %56 : f32 to vector<16x16xf32>
      %273 = arith.mulf %272, %271 : vector<16x16xf32>
      %274 = arith.addf %254, %273 : vector<16x16xf32>
      %275 = vector.extract_strided_slice %27 {offsets = [0, 4, 1], sizes = [1, 16, 16], strides = [1, 1, 1]} : vector<2x22x22xf32> to vector<1x16x16xf32>
      %276 = vector.shape_cast %275 : vector<1x16x16xf32> to vector<16x16xf32>
      %277 = vector.broadcast %57 : f32 to vector<16x16xf32>
      %278 = arith.mulf %277, %276 : vector<16x16xf32>
      %279 = arith.addf %259, %278 : vector<16x16xf32>
      %280 = vector.extract_strided_slice %27 {offsets = [0, 4, 2], sizes = [1, 16, 16], strides = [1, 1, 1]} : vector<2x22x22xf32> to vector<1x16x16xf32>
      %281 = vector.shape_cast %280 : vector<1x16x16xf32> to vector<16x16xf32>
      %282 = vector.broadcast %58 : f32 to vector<16x16xf32>
      %283 = arith.mulf %282, %281 : vector<16x16xf32>
      %284 = arith.addf %264, %283 : vector<16x16xf32>
      %285 = vector.extract_strided_slice %27 {offsets = [0, 4, 3], sizes = [1, 16, 16], strides = [1, 1, 1]} : vector<2x22x22xf32> to vector<1x16x16xf32>
      %286 = vector.shape_cast %285 : vector<1x16x16xf32> to vector<16x16xf32>
      %287 = vector.broadcast %59 : f32 to vector<16x16xf32>
      %288 = arith.mulf %287, %286 : vector<16x16xf32>
      %289 = arith.addf %269, %288 : vector<16x16xf32>
      %290 = vector.extract_strided_slice %27 {offsets = [0, 4, 4], sizes = [1, 16, 16], strides = [1, 1, 1]} : vector<2x22x22xf32> to vector<1x16x16xf32>
      %291 = vector.shape_cast %290 : vector<1x16x16xf32> to vector<16x16xf32>
      %292 = vector.broadcast %60 : f32 to vector<16x16xf32>
      %293 = arith.mulf %292, %291 : vector<16x16xf32>
      %294 = arith.addf %274, %293 : vector<16x16xf32>
      %295 = vector.extract_strided_slice %27 {offsets = [0, 4, 5], sizes = [1, 16, 16], strides = [1, 1, 1]} : vector<2x22x22xf32> to vector<1x16x16xf32>
      %296 = vector.shape_cast %295 : vector<1x16x16xf32> to vector<16x16xf32>
      %297 = vector.broadcast %61 : f32 to vector<16x16xf32>
      %298 = arith.mulf %297, %296 : vector<16x16xf32>
      %299 = arith.addf %279, %298 : vector<16x16xf32>
      %300 = vector.extract_strided_slice %27 {offsets = [0, 4, 6], sizes = [1, 16, 16], strides = [1, 1, 1]} : vector<2x22x22xf32> to vector<1x16x16xf32>
      %301 = vector.shape_cast %300 : vector<1x16x16xf32> to vector<16x16xf32>
      %302 = vector.broadcast %62 : f32 to vector<16x16xf32>
      %303 = arith.mulf %302, %301 : vector<16x16xf32>
      %304 = arith.addf %284, %303 : vector<16x16xf32>
      %305 = vector.extract_strided_slice %27 {offsets = [0, 5, 0], sizes = [1, 16, 16], strides = [1, 1, 1]} : vector<2x22x22xf32> to vector<1x16x16xf32>
      %306 = vector.shape_cast %305 : vector<1x16x16xf32> to vector<16x16xf32>
      %307 = vector.broadcast %63 : f32 to vector<16x16xf32>
      %308 = arith.mulf %307, %306 : vector<16x16xf32>
      %309 = arith.addf %289, %308 : vector<16x16xf32>
      %310 = vector.extract_strided_slice %27 {offsets = [0, 5, 1], sizes = [1, 16, 16], strides = [1, 1, 1]} : vector<2x22x22xf32> to vector<1x16x16xf32>
      %311 = vector.shape_cast %310 : vector<1x16x16xf32> to vector<16x16xf32>
      %312 = vector.broadcast %64 : f32 to vector<16x16xf32>
      %313 = arith.mulf %312, %311 : vector<16x16xf32>
      %314 = arith.addf %294, %313 : vector<16x16xf32>
      %315 = vector.extract_strided_slice %27 {offsets = [0, 5, 2], sizes = [1, 16, 16], strides = [1, 1, 1]} : vector<2x22x22xf32> to vector<1x16x16xf32>
      %316 = vector.shape_cast %315 : vector<1x16x16xf32> to vector<16x16xf32>
      %317 = vector.broadcast %65 : f32 to vector<16x16xf32>
      %318 = arith.mulf %317, %316 : vector<16x16xf32>
      %319 = arith.addf %299, %318 : vector<16x16xf32>
      %320 = vector.extract_strided_slice %27 {offsets = [0, 5, 3], sizes = [1, 16, 16], strides = [1, 1, 1]} : vector<2x22x22xf32> to vector<1x16x16xf32>
      %321 = vector.shape_cast %320 : vector<1x16x16xf32> to vector<16x16xf32>
      %322 = vector.broadcast %66 : f32 to vector<16x16xf32>
      %323 = arith.mulf %322, %321 : vector<16x16xf32>
      %324 = arith.addf %304, %323 : vector<16x16xf32>
      %325 = vector.extract_strided_slice %27 {offsets = [0, 5, 4], sizes = [1, 16, 16], strides = [1, 1, 1]} : vector<2x22x22xf32> to vector<1x16x16xf32>
      %326 = vector.shape_cast %325 : vector<1x16x16xf32> to vector<16x16xf32>
      %327 = vector.broadcast %67 : f32 to vector<16x16xf32>
      %328 = arith.mulf %327, %326 : vector<16x16xf32>
      %329 = arith.addf %309, %328 : vector<16x16xf32>
      %330 = vector.extract_strided_slice %27 {offsets = [0, 5, 5], sizes = [1, 16, 16], strides = [1, 1, 1]} : vector<2x22x22xf32> to vector<1x16x16xf32>
      %331 = vector.shape_cast %330 : vector<1x16x16xf32> to vector<16x16xf32>
      %332 = vector.broadcast %68 : f32 to vector<16x16xf32>
      %333 = arith.mulf %332, %331 : vector<16x16xf32>
      %334 = arith.addf %314, %333 : vector<16x16xf32>
      %335 = vector.extract_strided_slice %27 {offsets = [0, 5, 6], sizes = [1, 16, 16], strides = [1, 1, 1]} : vector<2x22x22xf32> to vector<1x16x16xf32>
      %336 = vector.shape_cast %335 : vector<1x16x16xf32> to vector<16x16xf32>
      %337 = vector.broadcast %69 : f32 to vector<16x16xf32>
      %338 = arith.mulf %337, %336 : vector<16x16xf32>
      %339 = arith.addf %319, %338 : vector<16x16xf32>
      %340 = vector.extract_strided_slice %27 {offsets = [0, 6, 0], sizes = [1, 16, 16], strides = [1, 1, 1]} : vector<2x22x22xf32> to vector<1x16x16xf32>
      %341 = vector.shape_cast %340 : vector<1x16x16xf32> to vector<16x16xf32>
      %342 = vector.broadcast %70 : f32 to vector<16x16xf32>
      %343 = arith.mulf %342, %341 : vector<16x16xf32>
      %344 = arith.addf %324, %343 : vector<16x16xf32>
      %345 = vector.extract_strided_slice %27 {offsets = [0, 6, 1], sizes = [1, 16, 16], strides = [1, 1, 1]} : vector<2x22x22xf32> to vector<1x16x16xf32>
      %346 = vector.shape_cast %345 : vector<1x16x16xf32> to vector<16x16xf32>
      %347 = vector.broadcast %71 : f32 to vector<16x16xf32>
      %348 = arith.mulf %347, %346 : vector<16x16xf32>
      %349 = arith.addf %329, %348 : vector<16x16xf32>
      %350 = vector.extract_strided_slice %27 {offsets = [0, 6, 2], sizes = [1, 16, 16], strides = [1, 1, 1]} : vector<2x22x22xf32> to vector<1x16x16xf32>
      %351 = vector.shape_cast %350 : vector<1x16x16xf32> to vector<16x16xf32>
      %352 = vector.broadcast %72 : f32 to vector<16x16xf32>
      %353 = arith.mulf %352, %351 : vector<16x16xf32>
      %354 = arith.addf %334, %353 : vector<16x16xf32>
      %355 = vector.extract_strided_slice %27 {offsets = [0, 6, 3], sizes = [1, 16, 16], strides = [1, 1, 1]} : vector<2x22x22xf32> to vector<1x16x16xf32>
      %356 = vector.shape_cast %355 : vector<1x16x16xf32> to vector<16x16xf32>
      %357 = vector.broadcast %73 : f32 to vector<16x16xf32>
      %358 = arith.mulf %357, %356 : vector<16x16xf32>
      %359 = arith.addf %339, %358 : vector<16x16xf32>
      %360 = vector.extract_strided_slice %27 {offsets = [0, 6, 4], sizes = [1, 16, 16], strides = [1, 1, 1]} : vector<2x22x22xf32> to vector<1x16x16xf32>
      %361 = vector.shape_cast %360 : vector<1x16x16xf32> to vector<16x16xf32>
      %362 = vector.broadcast %74 : f32 to vector<16x16xf32>
      %363 = arith.mulf %362, %361 : vector<16x16xf32>
      %364 = arith.addf %344, %363 : vector<16x16xf32>
      %365 = vector.extract_strided_slice %27 {offsets = [0, 6, 5], sizes = [1, 16, 16], strides = [1, 1, 1]} : vector<2x22x22xf32> to vector<1x16x16xf32>
      %366 = vector.shape_cast %365 : vector<1x16x16xf32> to vector<16x16xf32>
      %367 = vector.broadcast %75 : f32 to vector<16x16xf32>
      %368 = arith.mulf %367, %366 : vector<16x16xf32>
      %369 = arith.addf %349, %368 : vector<16x16xf32>
      %370 = vector.extract_strided_slice %27 {offsets = [0, 6, 6], sizes = [1, 16, 16], strides = [1, 1, 1]} : vector<2x22x22xf32> to vector<1x16x16xf32>
      %371 = vector.shape_cast %370 : vector<1x16x16xf32> to vector<16x16xf32>
      %372 = vector.broadcast %76 : f32 to vector<16x16xf32>
      %373 = arith.mulf %372, %371 : vector<16x16xf32>
      %374 = arith.addf %354, %373 : vector<16x16xf32>
      %375 = vector.extract_strided_slice %27 {offsets = [1, 0, 0], sizes = [1, 16, 16], strides = [1, 1, 1]} : vector<2x22x22xf32> to vector<1x16x16xf32>
      %376 = vector.shape_cast %375 : vector<1x16x16xf32> to vector<16x16xf32>
      %377 = vector.broadcast %77 : f32 to vector<16x16xf32>
      %378 = arith.mulf %377, %376 : vector<16x16xf32>
      %379 = arith.addf %359, %378 : vector<16x16xf32>
      %380 = vector.extract_strided_slice %27 {offsets = [1, 0, 1], sizes = [1, 16, 16], strides = [1, 1, 1]} : vector<2x22x22xf32> to vector<1x16x16xf32>
      %381 = vector.shape_cast %380 : vector<1x16x16xf32> to vector<16x16xf32>
      %382 = vector.broadcast %78 : f32 to vector<16x16xf32>
      %383 = arith.mulf %382, %381 : vector<16x16xf32>
      %384 = arith.addf %364, %383 : vector<16x16xf32>
      %385 = vector.extract_strided_slice %27 {offsets = [1, 0, 2], sizes = [1, 16, 16], strides = [1, 1, 1]} : vector<2x22x22xf32> to vector<1x16x16xf32>
      %386 = vector.shape_cast %385 : vector<1x16x16xf32> to vector<16x16xf32>
      %387 = vector.broadcast %79 : f32 to vector<16x16xf32>
      %388 = arith.mulf %387, %386 : vector<16x16xf32>
      %389 = arith.addf %369, %388 : vector<16x16xf32>
      %390 = vector.extract_strided_slice %27 {offsets = [1, 0, 3], sizes = [1, 16, 16], strides = [1, 1, 1]} : vector<2x22x22xf32> to vector<1x16x16xf32>
      %391 = vector.shape_cast %390 : vector<1x16x16xf32> to vector<16x16xf32>
      %392 = vector.broadcast %80 : f32 to vector<16x16xf32>
      %393 = arith.mulf %392, %391 : vector<16x16xf32>
      %394 = arith.addf %374, %393 : vector<16x16xf32>
      %395 = vector.extract_strided_slice %27 {offsets = [1, 0, 4], sizes = [1, 16, 16], strides = [1, 1, 1]} : vector<2x22x22xf32> to vector<1x16x16xf32>
      %396 = vector.shape_cast %395 : vector<1x16x16xf32> to vector<16x16xf32>
      %397 = vector.broadcast %81 : f32 to vector<16x16xf32>
      %398 = arith.mulf %397, %396 : vector<16x16xf32>
      %399 = arith.addf %379, %398 : vector<16x16xf32>
      %400 = vector.extract_strided_slice %27 {offsets = [1, 0, 5], sizes = [1, 16, 16], strides = [1, 1, 1]} : vector<2x22x22xf32> to vector<1x16x16xf32>
      %401 = vector.shape_cast %400 : vector<1x16x16xf32> to vector<16x16xf32>
      %402 = vector.broadcast %82 : f32 to vector<16x16xf32>
      %403 = arith.mulf %402, %401 : vector<16x16xf32>
      %404 = arith.addf %384, %403 : vector<16x16xf32>
      %405 = vector.extract_strided_slice %27 {offsets = [1, 0, 6], sizes = [1, 16, 16], strides = [1, 1, 1]} : vector<2x22x22xf32> to vector<1x16x16xf32>
      %406 = vector.shape_cast %405 : vector<1x16x16xf32> to vector<16x16xf32>
      %407 = vector.broadcast %83 : f32 to vector<16x16xf32>
      %408 = arith.mulf %407, %406 : vector<16x16xf32>
      %409 = arith.addf %389, %408 : vector<16x16xf32>
      %410 = vector.extract_strided_slice %27 {offsets = [1, 1, 0], sizes = [1, 16, 16], strides = [1, 1, 1]} : vector<2x22x22xf32> to vector<1x16x16xf32>
      %411 = vector.shape_cast %410 : vector<1x16x16xf32> to vector<16x16xf32>
      %412 = vector.broadcast %84 : f32 to vector<16x16xf32>
      %413 = arith.mulf %412, %411 : vector<16x16xf32>
      %414 = arith.addf %394, %413 : vector<16x16xf32>
      %415 = vector.extract_strided_slice %27 {offsets = [1, 1, 1], sizes = [1, 16, 16], strides = [1, 1, 1]} : vector<2x22x22xf32> to vector<1x16x16xf32>
      %416 = vector.shape_cast %415 : vector<1x16x16xf32> to vector<16x16xf32>
      %417 = vector.broadcast %85 : f32 to vector<16x16xf32>
      %418 = arith.mulf %417, %416 : vector<16x16xf32>
      %419 = arith.addf %399, %418 : vector<16x16xf32>
      %420 = vector.extract_strided_slice %27 {offsets = [1, 1, 2], sizes = [1, 16, 16], strides = [1, 1, 1]} : vector<2x22x22xf32> to vector<1x16x16xf32>
      %421 = vector.shape_cast %420 : vector<1x16x16xf32> to vector<16x16xf32>
      %422 = vector.broadcast %86 : f32 to vector<16x16xf32>
      %423 = arith.mulf %422, %421 : vector<16x16xf32>
      %424 = arith.addf %404, %423 : vector<16x16xf32>
      %425 = vector.extract_strided_slice %27 {offsets = [1, 1, 3], sizes = [1, 16, 16], strides = [1, 1, 1]} : vector<2x22x22xf32> to vector<1x16x16xf32>
      %426 = vector.shape_cast %425 : vector<1x16x16xf32> to vector<16x16xf32>
      %427 = vector.broadcast %87 : f32 to vector<16x16xf32>
      %428 = arith.mulf %427, %426 : vector<16x16xf32>
      %429 = arith.addf %409, %428 : vector<16x16xf32>
      %430 = vector.extract_strided_slice %27 {offsets = [1, 1, 4], sizes = [1, 16, 16], strides = [1, 1, 1]} : vector<2x22x22xf32> to vector<1x16x16xf32>
      %431 = vector.shape_cast %430 : vector<1x16x16xf32> to vector<16x16xf32>
      %432 = vector.broadcast %88 : f32 to vector<16x16xf32>
      %433 = arith.mulf %432, %431 : vector<16x16xf32>
      %434 = arith.addf %414, %433 : vector<16x16xf32>
      %435 = vector.extract_strided_slice %27 {offsets = [1, 1, 5], sizes = [1, 16, 16], strides = [1, 1, 1]} : vector<2x22x22xf32> to vector<1x16x16xf32>
      %436 = vector.shape_cast %435 : vector<1x16x16xf32> to vector<16x16xf32>
      %437 = vector.broadcast %89 : f32 to vector<16x16xf32>
      %438 = arith.mulf %437, %436 : vector<16x16xf32>
      %439 = arith.addf %419, %438 : vector<16x16xf32>
      %440 = vector.extract_strided_slice %27 {offsets = [1, 1, 6], sizes = [1, 16, 16], strides = [1, 1, 1]} : vector<2x22x22xf32> to vector<1x16x16xf32>
      %441 = vector.shape_cast %440 : vector<1x16x16xf32> to vector<16x16xf32>
      %442 = vector.broadcast %90 : f32 to vector<16x16xf32>
      %443 = arith.mulf %442, %441 : vector<16x16xf32>
      %444 = arith.addf %424, %443 : vector<16x16xf32>
      %445 = vector.extract_strided_slice %27 {offsets = [1, 2, 0], sizes = [1, 16, 16], strides = [1, 1, 1]} : vector<2x22x22xf32> to vector<1x16x16xf32>
      %446 = vector.shape_cast %445 : vector<1x16x16xf32> to vector<16x16xf32>
      %447 = vector.broadcast %91 : f32 to vector<16x16xf32>
      %448 = arith.mulf %447, %446 : vector<16x16xf32>
      %449 = arith.addf %429, %448 : vector<16x16xf32>
      %450 = vector.extract_strided_slice %27 {offsets = [1, 2, 1], sizes = [1, 16, 16], strides = [1, 1, 1]} : vector<2x22x22xf32> to vector<1x16x16xf32>
      %451 = vector.shape_cast %450 : vector<1x16x16xf32> to vector<16x16xf32>
      %452 = vector.broadcast %92 : f32 to vector<16x16xf32>
      %453 = arith.mulf %452, %451 : vector<16x16xf32>
      %454 = arith.addf %434, %453 : vector<16x16xf32>
      %455 = vector.extract_strided_slice %27 {offsets = [1, 2, 2], sizes = [1, 16, 16], strides = [1, 1, 1]} : vector<2x22x22xf32> to vector<1x16x16xf32>
      %456 = vector.shape_cast %455 : vector<1x16x16xf32> to vector<16x16xf32>
      %457 = vector.broadcast %93 : f32 to vector<16x16xf32>
      %458 = arith.mulf %457, %456 : vector<16x16xf32>
      %459 = arith.addf %439, %458 : vector<16x16xf32>
      %460 = vector.extract_strided_slice %27 {offsets = [1, 2, 3], sizes = [1, 16, 16], strides = [1, 1, 1]} : vector<2x22x22xf32> to vector<1x16x16xf32>
      %461 = vector.shape_cast %460 : vector<1x16x16xf32> to vector<16x16xf32>
      %462 = vector.broadcast %94 : f32 to vector<16x16xf32>
      %463 = arith.mulf %462, %461 : vector<16x16xf32>
      %464 = arith.addf %444, %463 : vector<16x16xf32>
      %465 = vector.extract_strided_slice %27 {offsets = [1, 2, 4], sizes = [1, 16, 16], strides = [1, 1, 1]} : vector<2x22x22xf32> to vector<1x16x16xf32>
      %466 = vector.shape_cast %465 : vector<1x16x16xf32> to vector<16x16xf32>
      %467 = vector.broadcast %95 : f32 to vector<16x16xf32>
      %468 = arith.mulf %467, %466 : vector<16x16xf32>
      %469 = arith.addf %449, %468 : vector<16x16xf32>
      %470 = vector.extract_strided_slice %27 {offsets = [1, 2, 5], sizes = [1, 16, 16], strides = [1, 1, 1]} : vector<2x22x22xf32> to vector<1x16x16xf32>
      %471 = vector.shape_cast %470 : vector<1x16x16xf32> to vector<16x16xf32>
      %472 = vector.broadcast %96 : f32 to vector<16x16xf32>
      %473 = arith.mulf %472, %471 : vector<16x16xf32>
      %474 = arith.addf %454, %473 : vector<16x16xf32>
      %475 = vector.extract_strided_slice %27 {offsets = [1, 2, 6], sizes = [1, 16, 16], strides = [1, 1, 1]} : vector<2x22x22xf32> to vector<1x16x16xf32>
      %476 = vector.shape_cast %475 : vector<1x16x16xf32> to vector<16x16xf32>
      %477 = vector.broadcast %97 : f32 to vector<16x16xf32>
      %478 = arith.mulf %477, %476 : vector<16x16xf32>
      %479 = arith.addf %459, %478 : vector<16x16xf32>
      %480 = vector.extract_strided_slice %27 {offsets = [1, 3, 0], sizes = [1, 16, 16], strides = [1, 1, 1]} : vector<2x22x22xf32> to vector<1x16x16xf32>
      %481 = vector.shape_cast %480 : vector<1x16x16xf32> to vector<16x16xf32>
      %482 = vector.broadcast %98 : f32 to vector<16x16xf32>
      %483 = arith.mulf %482, %481 : vector<16x16xf32>
      %484 = arith.addf %464, %483 : vector<16x16xf32>
      %485 = vector.extract_strided_slice %27 {offsets = [1, 3, 1], sizes = [1, 16, 16], strides = [1, 1, 1]} : vector<2x22x22xf32> to vector<1x16x16xf32>
      %486 = vector.shape_cast %485 : vector<1x16x16xf32> to vector<16x16xf32>
      %487 = vector.broadcast %99 : f32 to vector<16x16xf32>
      %488 = arith.mulf %487, %486 : vector<16x16xf32>
      %489 = arith.addf %469, %488 : vector<16x16xf32>
      %490 = vector.extract_strided_slice %27 {offsets = [1, 3, 2], sizes = [1, 16, 16], strides = [1, 1, 1]} : vector<2x22x22xf32> to vector<1x16x16xf32>
      %491 = vector.shape_cast %490 : vector<1x16x16xf32> to vector<16x16xf32>
      %492 = vector.broadcast %100 : f32 to vector<16x16xf32>
      %493 = arith.mulf %492, %491 : vector<16x16xf32>
      %494 = arith.addf %474, %493 : vector<16x16xf32>
      %495 = vector.extract_strided_slice %27 {offsets = [1, 3, 3], sizes = [1, 16, 16], strides = [1, 1, 1]} : vector<2x22x22xf32> to vector<1x16x16xf32>
      %496 = vector.shape_cast %495 : vector<1x16x16xf32> to vector<16x16xf32>
      %497 = vector.broadcast %101 : f32 to vector<16x16xf32>
      %498 = arith.mulf %497, %496 : vector<16x16xf32>
      %499 = arith.addf %479, %498 : vector<16x16xf32>
      %500 = vector.extract_strided_slice %27 {offsets = [1, 3, 4], sizes = [1, 16, 16], strides = [1, 1, 1]} : vector<2x22x22xf32> to vector<1x16x16xf32>
      %501 = vector.shape_cast %500 : vector<1x16x16xf32> to vector<16x16xf32>
      %502 = vector.broadcast %102 : f32 to vector<16x16xf32>
      %503 = arith.mulf %502, %501 : vector<16x16xf32>
      %504 = arith.addf %484, %503 : vector<16x16xf32>
      %505 = vector.extract_strided_slice %27 {offsets = [1, 3, 5], sizes = [1, 16, 16], strides = [1, 1, 1]} : vector<2x22x22xf32> to vector<1x16x16xf32>
      %506 = vector.shape_cast %505 : vector<1x16x16xf32> to vector<16x16xf32>
      %507 = vector.broadcast %103 : f32 to vector<16x16xf32>
      %508 = arith.mulf %507, %506 : vector<16x16xf32>
      %509 = arith.addf %489, %508 : vector<16x16xf32>
      %510 = vector.extract_strided_slice %27 {offsets = [1, 3, 6], sizes = [1, 16, 16], strides = [1, 1, 1]} : vector<2x22x22xf32> to vector<1x16x16xf32>
      %511 = vector.shape_cast %510 : vector<1x16x16xf32> to vector<16x16xf32>
      %512 = vector.broadcast %104 : f32 to vector<16x16xf32>
      %513 = arith.mulf %512, %511 : vector<16x16xf32>
      %514 = arith.addf %494, %513 : vector<16x16xf32>
      %515 = vector.extract_strided_slice %27 {offsets = [1, 4, 0], sizes = [1, 16, 16], strides = [1, 1, 1]} : vector<2x22x22xf32> to vector<1x16x16xf32>
      %516 = vector.shape_cast %515 : vector<1x16x16xf32> to vector<16x16xf32>
      %517 = vector.broadcast %105 : f32 to vector<16x16xf32>
      %518 = arith.mulf %517, %516 : vector<16x16xf32>
      %519 = arith.addf %499, %518 : vector<16x16xf32>
      %520 = vector.extract_strided_slice %27 {offsets = [1, 4, 1], sizes = [1, 16, 16], strides = [1, 1, 1]} : vector<2x22x22xf32> to vector<1x16x16xf32>
      %521 = vector.shape_cast %520 : vector<1x16x16xf32> to vector<16x16xf32>
      %522 = vector.broadcast %106 : f32 to vector<16x16xf32>
      %523 = arith.mulf %522, %521 : vector<16x16xf32>
      %524 = arith.addf %504, %523 : vector<16x16xf32>
      %525 = vector.extract_strided_slice %27 {offsets = [1, 4, 2], sizes = [1, 16, 16], strides = [1, 1, 1]} : vector<2x22x22xf32> to vector<1x16x16xf32>
      %526 = vector.shape_cast %525 : vector<1x16x16xf32> to vector<16x16xf32>
      %527 = vector.broadcast %107 : f32 to vector<16x16xf32>
      %528 = arith.mulf %527, %526 : vector<16x16xf32>
      %529 = arith.addf %509, %528 : vector<16x16xf32>
      %530 = vector.extract_strided_slice %27 {offsets = [1, 4, 3], sizes = [1, 16, 16], strides = [1, 1, 1]} : vector<2x22x22xf32> to vector<1x16x16xf32>
      %531 = vector.shape_cast %530 : vector<1x16x16xf32> to vector<16x16xf32>
      %532 = vector.broadcast %108 : f32 to vector<16x16xf32>
      %533 = arith.mulf %532, %531 : vector<16x16xf32>
      %534 = arith.addf %514, %533 : vector<16x16xf32>
      %535 = vector.extract_strided_slice %27 {offsets = [1, 4, 4], sizes = [1, 16, 16], strides = [1, 1, 1]} : vector<2x22x22xf32> to vector<1x16x16xf32>
      %536 = vector.shape_cast %535 : vector<1x16x16xf32> to vector<16x16xf32>
      %537 = vector.broadcast %109 : f32 to vector<16x16xf32>
      %538 = arith.mulf %537, %536 : vector<16x16xf32>
      %539 = arith.addf %519, %538 : vector<16x16xf32>
      %540 = vector.extract_strided_slice %27 {offsets = [1, 4, 5], sizes = [1, 16, 16], strides = [1, 1, 1]} : vector<2x22x22xf32> to vector<1x16x16xf32>
      %541 = vector.shape_cast %540 : vector<1x16x16xf32> to vector<16x16xf32>
      %542 = vector.broadcast %110 : f32 to vector<16x16xf32>
      %543 = arith.mulf %542, %541 : vector<16x16xf32>
      %544 = arith.addf %524, %543 : vector<16x16xf32>
      %545 = vector.extract_strided_slice %27 {offsets = [1, 4, 6], sizes = [1, 16, 16], strides = [1, 1, 1]} : vector<2x22x22xf32> to vector<1x16x16xf32>
      %546 = vector.shape_cast %545 : vector<1x16x16xf32> to vector<16x16xf32>
      %547 = vector.broadcast %111 : f32 to vector<16x16xf32>
      %548 = arith.mulf %547, %546 : vector<16x16xf32>
      %549 = arith.addf %529, %548 : vector<16x16xf32>
      %550 = vector.extract_strided_slice %27 {offsets = [1, 5, 0], sizes = [1, 16, 16], strides = [1, 1, 1]} : vector<2x22x22xf32> to vector<1x16x16xf32>
      %551 = vector.shape_cast %550 : vector<1x16x16xf32> to vector<16x16xf32>
      %552 = vector.broadcast %112 : f32 to vector<16x16xf32>
      %553 = arith.mulf %552, %551 : vector<16x16xf32>
      %554 = arith.addf %534, %553 : vector<16x16xf32>
      %555 = vector.extract_strided_slice %27 {offsets = [1, 5, 1], sizes = [1, 16, 16], strides = [1, 1, 1]} : vector<2x22x22xf32> to vector<1x16x16xf32>
      %556 = vector.shape_cast %555 : vector<1x16x16xf32> to vector<16x16xf32>
      %557 = vector.broadcast %113 : f32 to vector<16x16xf32>
      %558 = arith.mulf %557, %556 : vector<16x16xf32>
      %559 = arith.addf %539, %558 : vector<16x16xf32>
      %560 = vector.extract_strided_slice %27 {offsets = [1, 5, 2], sizes = [1, 16, 16], strides = [1, 1, 1]} : vector<2x22x22xf32> to vector<1x16x16xf32>
      %561 = vector.shape_cast %560 : vector<1x16x16xf32> to vector<16x16xf32>
      %562 = vector.broadcast %114 : f32 to vector<16x16xf32>
      %563 = arith.mulf %562, %561 : vector<16x16xf32>
      %564 = arith.addf %544, %563 : vector<16x16xf32>
      %565 = vector.extract_strided_slice %27 {offsets = [1, 5, 3], sizes = [1, 16, 16], strides = [1, 1, 1]} : vector<2x22x22xf32> to vector<1x16x16xf32>
      %566 = vector.shape_cast %565 : vector<1x16x16xf32> to vector<16x16xf32>
      %567 = vector.broadcast %115 : f32 to vector<16x16xf32>
      %568 = arith.mulf %567, %566 : vector<16x16xf32>
      %569 = arith.addf %549, %568 : vector<16x16xf32>
      %570 = vector.extract_strided_slice %27 {offsets = [1, 5, 4], sizes = [1, 16, 16], strides = [1, 1, 1]} : vector<2x22x22xf32> to vector<1x16x16xf32>
      %571 = vector.shape_cast %570 : vector<1x16x16xf32> to vector<16x16xf32>
      %572 = vector.broadcast %116 : f32 to vector<16x16xf32>
      %573 = arith.mulf %572, %571 : vector<16x16xf32>
      %574 = arith.addf %554, %573 : vector<16x16xf32>
      %575 = vector.extract_strided_slice %27 {offsets = [1, 5, 5], sizes = [1, 16, 16], strides = [1, 1, 1]} : vector<2x22x22xf32> to vector<1x16x16xf32>
      %576 = vector.shape_cast %575 : vector<1x16x16xf32> to vector<16x16xf32>
      %577 = vector.broadcast %117 : f32 to vector<16x16xf32>
      %578 = arith.mulf %577, %576 : vector<16x16xf32>
      %579 = arith.addf %559, %578 : vector<16x16xf32>
      %580 = vector.extract_strided_slice %27 {offsets = [1, 5, 6], sizes = [1, 16, 16], strides = [1, 1, 1]} : vector<2x22x22xf32> to vector<1x16x16xf32>
      %581 = vector.shape_cast %580 : vector<1x16x16xf32> to vector<16x16xf32>
      %582 = vector.broadcast %118 : f32 to vector<16x16xf32>
      %583 = arith.mulf %582, %581 : vector<16x16xf32>
      %584 = arith.addf %564, %583 : vector<16x16xf32>
      %585 = vector.extract_strided_slice %27 {offsets = [1, 6, 0], sizes = [1, 16, 16], strides = [1, 1, 1]} : vector<2x22x22xf32> to vector<1x16x16xf32>
      %586 = vector.shape_cast %585 : vector<1x16x16xf32> to vector<16x16xf32>
      %587 = vector.broadcast %119 : f32 to vector<16x16xf32>
      %588 = arith.mulf %587, %586 : vector<16x16xf32>
      %589 = arith.addf %569, %588 : vector<16x16xf32>
      %590 = vector.extract_strided_slice %27 {offsets = [1, 6, 1], sizes = [1, 16, 16], strides = [1, 1, 1]} : vector<2x22x22xf32> to vector<1x16x16xf32>
      %591 = vector.shape_cast %590 : vector<1x16x16xf32> to vector<16x16xf32>
      %592 = vector.broadcast %120 : f32 to vector<16x16xf32>
      %593 = arith.mulf %592, %591 : vector<16x16xf32>
      %594 = arith.addf %574, %593 : vector<16x16xf32>
      %595 = vector.extract_strided_slice %27 {offsets = [1, 6, 2], sizes = [1, 16, 16], strides = [1, 1, 1]} : vector<2x22x22xf32> to vector<1x16x16xf32>
      %596 = vector.shape_cast %595 : vector<1x16x16xf32> to vector<16x16xf32>
      %597 = vector.broadcast %121 : f32 to vector<16x16xf32>
      %598 = arith.mulf %597, %596 : vector<16x16xf32>
      %599 = arith.addf %579, %598 : vector<16x16xf32>
      %600 = vector.extract_strided_slice %27 {offsets = [1, 6, 3], sizes = [1, 16, 16], strides = [1, 1, 1]} : vector<2x22x22xf32> to vector<1x16x16xf32>
      %601 = vector.shape_cast %600 : vector<1x16x16xf32> to vector<16x16xf32>
      %602 = vector.broadcast %122 : f32 to vector<16x16xf32>
      %603 = arith.mulf %602, %601 : vector<16x16xf32>
      %604 = arith.addf %584, %603 : vector<16x16xf32>
      %605 = vector.extract_strided_slice %27 {offsets = [1, 6, 4], sizes = [1, 16, 16], strides = [1, 1, 1]} : vector<2x22x22xf32> to vector<1x16x16xf32>
      %606 = vector.shape_cast %605 : vector<1x16x16xf32> to vector<16x16xf32>
      %607 = vector.broadcast %123 : f32 to vector<16x16xf32>
      %608 = arith.mulf %607, %606 : vector<16x16xf32>
      %609 = arith.addf %589, %608 : vector<16x16xf32>
      %610 = vector.extract_strided_slice %27 {offsets = [1, 6, 5], sizes = [1, 16, 16], strides = [1, 1, 1]} : vector<2x22x22xf32> to vector<1x16x16xf32>
      %611 = vector.shape_cast %610 : vector<1x16x16xf32> to vector<16x16xf32>
      %612 = vector.broadcast %124 : f32 to vector<16x16xf32>
      %613 = arith.mulf %612, %611 : vector<16x16xf32>
      %614 = arith.addf %594, %613 : vector<16x16xf32>
      %615 = vector.extract_strided_slice %27 {offsets = [1, 6, 6], sizes = [1, 16, 16], strides = [1, 1, 1]} : vector<2x22x22xf32> to vector<1x16x16xf32>
      %616 = vector.shape_cast %615 : vector<1x16x16xf32> to vector<16x16xf32>
      %617 = vector.broadcast %125 : f32 to vector<16x16xf32>
      %618 = arith.mulf %617, %616 : vector<16x16xf32>
      %619 = arith.addf %599, %618 : vector<16x16xf32>
      %620 = arith.addf %614, %619 : vector<16x16xf32>
      %621 = arith.addf %604, %609 : vector<16x16xf32>
      %622 = arith.addf %620, %621 : vector<16x16xf32>
      %623 = arith.negf %622 : vector<16x16xf32>
      %624 = math.exp %623 : vector<16x16xf32>
      %cst_37 = arith.constant 1.000000e+00 : f32
      %625 = vector.broadcast %cst_37 : f32 to vector<16x16xf32>
      %626 = arith.addf %625, %624 : vector<16x16xf32>
      %627 = arith.divf %625, %626 : vector<16x16xf32>
      %c0_38 = arith.constant 0 : index
      %c0_39 = arith.constant 0 : index
      %c0_40 = arith.constant 0 : index
      %628 = vector.load %arg4[%c0_38, %c0_39, %c0_40] : memref<1x16x16xf32, #tpu.memory_space<vmem>>, vector<1x16x16xf32>
      %629 = vector.shape_cast %628 : vector<1x16x16xf32> to vector<16x16xf32>
      %630 = vector.shape_cast %627 : vector<16x16xf32> to vector<1x16x16xf32>
      tpu.vector_store %arg4[%c0_38, %c0_39, %c0_40], %630 {strides = array<i32>} : memref<1x16x16xf32, #tpu.memory_space<vmem>>, vector<1x16x16xf32>,
    } else {
    }
    return
  }
  func.func @transform_0(%arg0: i32, %arg1: i32) -> (i32, i32, i32, i32) {
    %c0_i32 = arith.constant 0 : i32
    %c0_i32_0 = arith.constant 0 : i32
    %c0_i32_1 = arith.constant 0 : i32
    return %arg0, %arg1, %c0_i32, %c0_i32_0 : i32, i32, i32, i32
  }
  func.func @transform_1(%arg0: i32, %arg1: i32) -> i32 {
    %c0_i32 = arith.constant 0 : i32
    %c0_i32_0 = arith.constant 0 : i32
    return %c0_i32 : i32
  }
  func.func @transform_2(%arg0: i32, %arg1: i32) -> (i32, i32, i32) {
    %c0_i32 = arith.constant 0 : i32
    %c0_i32_0 = arith.constant 0 : i32
    %c0_i32_1 = arith.constant 0 : i32
    return %arg0, %c0_i32, %c0_i32_0 : i32, i32, i32
  }
}

</mosaic_0001>

<llo_original>
// kernel: tpu_custom_call.1
$region0: #{tpu_custom_call.1}
  #allocation0 [shape = 'u32[]', space=smem, size = 0x4, offset = 0x4, fixed_abs, tag = 'smem constant byte address 0x4 - core index']
  #allocation1 [shape = 'u32[144,128]{1,0:T(1,128)}', space=vmem, size = 0x12000, scoped, tag = 'internal scratch']
  #allocation2 [shape = 'f32[2,16,16]{2,1,0:T(8,128)}', space=vmem, size = 0x4000, scoped, tag = 'scratch operand']
  #allocation3 [shape = 'f32[2,22,22]{2,1,0:T(8,128)}', space=vmem, size = 0x6000, scoped, tag = 'scratch operand']
  %s0 = inlined_call_operand.hbm [shape: f32[2,4,16,16], index: 0, kind: input, shape index: {}]
  %s1 = inlined_call_operand.vmem [shape: f32[98], index: 1, kind: input, shape index: {}]
  %s2 = inlined_call_operand.hbm [shape: f32[2,16,16], index: 2, kind: output, shape index: {}]
  %s3 = sld [smem:[#allocation0]]
  $region61: #{tpu_custom_call.1} parent=0
    _
  %s5 = ssub.s32 1, %s3
  %s6 = scalar_select 0, %s5, %s3
  $region1: #{tpu_custom_call.1} parent=0
    #allocation4 [shape = 'u8[65536]{0}', space=vmem, size = 0x10000, scoped, tag = 'input window, operand 0']
    #allocation5 [shape = 's32[2]{0}', space=sflag, size = 0x8, scoped, tag = 'scoped memory for tpu_custom_call.1']
    #allocation6 [shape = 's32[2]{0}', space=sflag, size = 0x8, scoped, tag = 'scoped memory for tpu_custom_call.1']
    #allocation7 [shape = 's32[2]{0}', space=sflag, size = 0x8, scoped, tag = 'scoped memory for tpu_custom_call.1']
    #allocation8 [shape = 'u8[512]{0}', space=smem, size = 0x200, scoped, tag = 'input window, operand 1, single buffered']
    #allocation9 [shape = 'u8[16384]{0}', space=vmem, size = 0x4000, scoped, tag = 'output window, operand 0']
    %7 = vsyncpa [#allocation5], 0
    %s8 = scalar_lea.sflag [#allocation5], 1
    %9 = vsyncpa %s8, 0
    %10 = vsyncpa [#allocation7], 0
    %11 = vsyncpa [#allocation6], 0
    %s12 = scalar_lea.sflag [#allocation6], 1
    %13 = vsyncpa %s12, 0
    loop: start=0, step=1, limit=4
    $region2: #{tpu_custom_call.1} parent=1 // loop_pre_header
      _
    $region3: #{tpu_custom_call.1} parent=1 // loop_header
      %s15 = sphi 0, %s19
      %p16 = scmp.ge.s32.totalorder %s15, 4
      %s22 = sphi 0, %s34
      %s23 = sphi 0, %s30
      %s24 = sphi 0, %s22
      %s25 = sphi 0, %s23
      %s26 = sphi 0, %s24
      %s27 = sphi 0, %s25
      %s39 = sphi 0, %s41
      %s42 = sphi 0, %s39
      %s43 = sphi 0, %s42
      %s59 = sphi 0, %s43
      %s63 = sphi 0, %s63
      %s65 = sphi 0, %s63
      %s66 = sphi 0, %s65
      %s80 = sphi 0, %s66
      %s86 = sphi 0, %s88
      %s89 = sphi 0, %s86
      %s90 = sphi 0, %s89
      %s106 = sphi 0, %s90
    $region4: #{tpu_custom_call.1} parent=1 // loop_header_branch
      %18 = sbr.rel (%p16) target = $region8
    $region5: #{tpu_custom_call.1} parent=1 // loop_body
      %s20 = ssub.s32 %s15, 1
      %s21 = ssub.s32 %s15, 2
      %s28 = sadd.s32 1, %s23
      %p29 = scmp.ge.s32.totalorder %s28, 1
      %s30 = scalar_select %p29, 0, %s28
      %s31 = sadd.s32 1, %s22
      %s32 = scalar_select %p29, %s31, %s22
      %p33 = scmp.ge.s32.totalorder %s32, 2
      %s34 = scalar_select %p33, 0, %s32
      %s35 = ssub.s32 %s22, %s34
      %s36 = ssub.s32 %s23, %s30
      %s37 = sor.u32 %s35, %s36
      %p38 = scmp.eq.s32.totalorder %s37, 0
      %s40 = sadd.s32 %s39, 1
      %s41 = scalar_select %p38, %s39, %s40
      %p44 = pneg %p38
      %p45 = scmp.eq.s32.totalorder %s15, 1
      %p46 = por %p44, %p45
      %p47 = scmp.ne.s32.totalorder %s39, %s42
      %p48 = scmp.eq.s32.totalorder %s15, 0
      %p49 = por %p47, %p48
      %p50 = scmp.ne.s32.totalorder %s39, %s42
      %p51 = scmp.eq.s32.totalorder %s20, 1
      %p52 = por %p50, %p51
      %p53 = scmp.ne.s32.totalorder %s42, %s43
      %p54 = scmp.eq.s32.totalorder %s20, 0
      %p55 = por %p53, %p54
      %p56 = scmp.ne.s32.totalorder %s42, %s43
      %p57 = scmp.eq.s32.totalorder %s21, 1
      %p58 = por %p56, %p57
      %p60 = scmp.ne.s32.totalorder %s43, %s59
      %p61 = scmp.eq.s32.totalorder %s21, 0
      %p62 = por %p60, %p61
      %s64 = sadd.s32 %s63, 1
      %p67 = scmp.eq.s32.totalorder %s15, 1
      %p68 = scmp.ne.s32.totalorder %s63, %s65
      %p69 = scmp.eq.s32.totalorder %s15, 0
      %p70 = por %p68, %p69
      %p71 = scmp.ne.s32.totalorder %s63, %s65
      %p72 = scmp.eq.s32.totalorder %s20, 1
      %p73 = por %p71, %p72
      %p74 = scmp.ne.s32.totalorder %s65, %s66
      %p75 = scmp.eq.s32.totalorder %s20, 0
      %p76 = por %p74, %p75
      %p77 = scmp.ne.s32.totalorder %s65, %s66
      %p78 = scmp.eq.s32.totalorder %s21, 1
      %p79 = por %p77, %p78
      %p81 = scmp.ne.s32.totalorder %s66, %s80
      %p82 = scmp.eq.s32.totalorder %s21, 0
      %p83 = por %p81, %p82
      %s84 = ssub.s32 %s22, %s34
      %p85 = scmp.eq.s32.totalorder %s84, 0
      %s87 = sadd.s32 %s86, 1
      %s88 = scalar_select %p85, %s86, %s87
      %p91 = pneg %p85
      %p92 = scmp.eq.s32.totalorder %s15, 1
      %p93 = por %p91, %p92
      %p94 = scmp.ne.s32.totalorder %s86, %s89
      %p95 = scmp.eq.s32.totalorder %s15, 0
      %p96 = por %p94, %p95
      %p97 = scmp.ne.s32.totalorder %s86, %s89
      %p98 = scmp.eq.s32.totalorder %s20, 1
      %p99 = por %p97, %p98
      %p100 = scmp.ne.s32.totalorder %s89, %s90
      %p101 = scmp.eq.s32.totalorder %s20, 0
      %p102 = por %p100, %p101
      %p103 = scmp.ne.s32.totalorder %s89, %s90
      %p104 = scmp.eq.s32.totalorder %s21, 1
      %p105 = por %p103, %p104
      %p107 = scmp.ne.s32.totalorder %s90, %s106
      %p108 = scmp.eq.s32.totalorder %s21, 0
      %p109 = por %p107, %p108
      %p110 = scmp.le.s32.totalorder 1, %s15
      %p111 = scmp.lt.s32.totalorder %s15, 3
      %p112 = pnand %p110, %p111
      %p113 = pneg %p112
      // Predicated region
      $region9: #{tpu_custom_call.1} parent=5 // pred_check
        _
      $region10: #{tpu_custom_call.1} parent=5 // pred_check_branch
        %115 = sbr.rel (%p112) target = $region12
      $region11: #{tpu_custom_call.1} parent=5 // pred_region
        %s116 = ssub.s32 %s15, 1
        // Predicated region
        $region13: #{tpu_custom_call.1} parent=11 // pred_check
          %p117 = pneg %p76
        $region14: #{tpu_custom_call.1} parent=11 // pred_check_branch
          %119 = sbr.rel (%p117) target = $region16
        $region15: #{tpu_custom_call.1} parent=11 // pred_region
          %s121 = ssub.s32 16, 16
          %122 = vsyncadd [#allocation7], %s121
          %s124 = sshll.u32 %s1, 4
          %s125 = int_to_ptr.vmem [resolvable:$true] %s124
          %127 = dma.vmem_to_smem %s125, 16, [#allocation8], [#allocation7]
        $region16: #{tpu_custom_call.1} parent=11 // pred_fallthru
          _
      $region12: #{tpu_custom_call.1} parent=5 // pred_fallthru
        _
      %p128 = scmp.lt.s32.totalorder %s15, 2
      // Predicated region
      $region17: #{tpu_custom_call.1} parent=5 // pred_check
        %p129 = pneg %p128
      $region18: #{tpu_custom_call.1} parent=5 // pred_check_branch
        %131 = sbr.rel (%p129) target = $region20
      $region19: #{tpu_custom_call.1} parent=5 // pred_region
        // Predicated region
        $region21: #{tpu_custom_call.1} parent=19 // pred_check
          %p132 = pneg %p49
        $region22: #{tpu_custom_call.1} parent=19 // pred_check_branch
          %134 = sbr.rel (%p132) target = $region24
        $region23: #{tpu_custom_call.1} parent=19 // pred_region
          %s135 = sand.u32 %s39, 1
          %s136 = scalar_lea.sflag [#allocation5], %s135
          %s137 = sand.u32 %s39, 1
          %s138 = smul.addr %s137, 64
          %s139 = scalar_lea.vmem [#allocation4], %s138
          %s140 = smul.u32 4, %s23
          %s142 = ssub.s32 1024, 1024
          %143 = vsyncadd %s136, %s142
          %s144 = smul.addr %s140, 2
          %s145 = smul.addr %s22, 8
          %s146 = sadd.s32 %s144, %s145
          %s147 = smul.addr %s146, 128
          %s148 = scalar_lea.hbm %s0, %s147
          %s149 = sshll.u32 %s139, 4
          %s150 = int_to_ptr.vmem [resolvable:$true] %s149
          %155 = dma.hbm_to_vmem [thread:$0]  %s148, 1024, %s150, %s136, 128, 128, 8
        $region24: #{tpu_custom_call.1} parent=19 // pred_fallthru
          _
      $region20: #{tpu_custom_call.1} parent=5 // pred_fallthru
        _
      %p156 = scmp.le.s32.totalorder 1, %s15
      %p157 = scmp.lt.s32.totalorder %s15, 3
      %p158 = pnand %p156, %p157
      %p159 = pneg %p158
      // Predicated region
      $region25: #{tpu_custom_call.1} parent=5 // pred_check
        _
      $region26: #{tpu_custom_call.1} parent=5 // pred_check_branch
        %161 = sbr.rel (%p158) target = $region28
      $region27: #{tpu_custom_call.1} parent=5 // pred_region
        %s162 = ssub.s32 %s15, 1
        %s163 = sand.u32 %s42, 1
        %s164 = scalar_lea.sflag [#allocation5], %s163
        %s165 = sand.u32 %s42, 1
        %s166 = smul.addr %s165, 64
        %s167 = scalar_lea.vmem [#allocation4], %s166
        // Predicated region
        $region29: #{tpu_custom_call.1} parent=27 // pred_check
          %p168 = pneg %p55
        $region30: #{tpu_custom_call.1} parent=27 // pred_check_branch
          %170 = sbr.rel (%p168) target = $region32
        $region31: #{tpu_custom_call.1} parent=27 // pred_region
          %171 = dma.done %s164, 1024
        $region32: #{tpu_custom_call.1} parent=27 // pred_fallthru
          _
        // Predicated region
        $region33: #{tpu_custom_call.1} parent=27 // pred_check
          %p172 = pneg %p76
        $region34: #{tpu_custom_call.1} parent=27 // pred_check_branch
          %174 = sbr.rel (%p172) target = $region36
        $region35: #{tpu_custom_call.1} parent=27 // pred_region
          %175 = dma.done [#allocation7], 16
        $region36: #{tpu_custom_call.1} parent=27 // pred_fallthru
          _
        %176 = sfence
        %s177 = sand.u32 %s42, 1
        %s178 = scalar_lea.sflag [#allocation5], %s177
        %s179 = sand.u32 %s42, 1
        %s180 = smul.addr %s179, 64
        %s181 = scalar_lea.vmem [#allocation4], %s180
        %p182 = pneg %p55
        %p183 = pneg %p52
        %p184 = pneg %p76
        %p185 = pneg %p73
        %p186 = pneg %p102
        %p187 = pneg %p99
        %s188 = sand.u32 %s89, 1
        %s189 = scalar_lea.sflag [#allocation6], %s188
        %s190 = sand.u32 %s89, 1
        %s191 = smul.addr %s190, 16
        %s192 = scalar_lea.vmem [#allocation9], %s191
        %s193 = smul.u32 4, %s25
        %v194 = vld [vmem:[%s167] sm:$0xff]
        %v195 = vld [vmem:[%s167 + $0x8] sm:$0xff]
        %s196 = scalar_lea.vmem %s167, 16 [#allocation4]
        %v197 = vld [vmem:[%s196] sm:$0xff]
        %v198 = vld [vmem:[%s196 + $0x8] sm:$0xff]
        %v199 = vadd.f32 %v194, %v197
        %v200 = vadd.f32 %v195, %v198
        %v201 = vmax.f32 %v194, %v197
        %v202 = vmax.f32 %v195, %v198
        %s203 = scalar_lea.vmem %s167, 32 [#allocation4]
        %v204 = vld [vmem:[%s203] sm:$0xff]
        %v205 = vld [vmem:[%s203 + $0x8] sm:$0xff]
        %v206 = vadd.f32 %v199, %v204
        %v207 = vadd.f32 %v200, %v205
        %v208 = vmax.f32 %v201, %v204
        %v209 = vmax.f32 %v202, %v205
        %s210 = scalar_lea.vmem %s167, 48 [#allocation4]
        %v211 = vld [vmem:[%s210] sm:$0xff]
        %v212 = vld [vmem:[%s210 + $0x8] sm:$0xff]
        %v213 = vadd.f32 %v206, %v211
        %v214 = vadd.f32 %v207, %v212
        %v215 = vmax.f32 %v208, %v211
        %v216 = vmax.f32 %v209, %v212
        %p217 = scmp.eq.s32.totalorder %s25, 0
        // Predicated region
        $region37: #{tpu_custom_call.1} parent=27 // pred_check
          %p218 = pneg %p217
        $region38: #{tpu_custom_call.1} parent=27 // pred_check_branch
          %220 = sbr.rel (%p218) target = $region40
        $region39: #{tpu_custom_call.1} parent=27 // pred_region
          %vm221 = vcmask 130048
          %222 = vst.msk [vmem:[#allocation2] sm:$0xff] %vm221, %v213
          %223 = vst.msk [vmem:[#allocation2 + $0x8] sm:$0xff] %vm221, %v214
          %s224 = scalar_lea.vmem [#allocation2], 16
          %225 = vst.msk [vmem:[%s224] sm:$0xff] %vm221, %v215
          %226 = vst.msk [vmem:[%s224 + $0x8] sm:$0xff] %vm221, %v216
        $region40: #{tpu_custom_call.1} parent=27 // pred_fallthru
          _
        %p227 = scmp.gt.s32.totalorder %s25, 0
        // Predicated region
        $region41: #{tpu_custom_call.1} parent=27 // pred_check
          %p228 = pneg %p227
        $region42: #{tpu_custom_call.1} parent=27 // pred_check_branch
          %230 = sbr.rel (%p228) target = $region44
        $region43: #{tpu_custom_call.1} parent=27 // pred_region
          %v231 = vld [vmem:[#allocation2] sm:$0xff]
          %v232 = vld [vmem:[#allocation2 + $0x8] sm:$0xff]
          %v233 = vadd.f32 %v231, %v213
          %v234 = vadd.f32 %v232, %v214
          %vm235 = vcmask 130048
          %236 = vst.msk [vmem:[#allocation2] sm:$0xff] %vm235, %v233
          %237 = vst.msk [vmem:[#allocation2 + $0x8] sm:$0xff] %vm235, %v234
          %s238 = scalar_lea.vmem [#allocation2], 16
          %v239 = vld [vmem:[%s238] sm:$0xff]
          %v240 = vld [vmem:[%s238 + $0x8] sm:$0xff]
          %v241 = vmax.f32 %v239, %v215
          %v242 = vmax.f32 %v240, %v216
          %243 = vst.msk [vmem:[%s238] sm:$0xff] %vm235, %v241
          %244 = vst.msk [vmem:[%s238 + $0x8] sm:$0xff] %vm235, %v242
        $region44: #{tpu_custom_call.1} parent=27 // pred_fallthru
          _
        // Predicated region
        $region45: #{tpu_custom_call.1} parent=27 // pred_check
          %p245 = pneg %p217
        $region46: #{tpu_custom_call.1} parent=27 // pred_check_branch
          %247 = sbr.rel (%p245) target = $region48
        $region47: #{tpu_custom_call.1} parent=27 // pred_region
          %vm248 = vcmask 179200
          %249 = vst.msk [vmem:[#allocation3] sm:$0xff] %vm248, 0.0
          %250 = vst.msk [vmem:[#allocation3 + $0x8] sm:$0xff] %vm248, 0.0
          %vm251 = vcmask 177152
          %252 = vst.msk [vmem:[#allocation3 + $0x10] sm:$0x3f] %vm251, 0.0
          %253 = vst.msk [vmem:[#allocation3 + $0x18] sm:$0xff] %vm248, 0.0
          %254 = vst.msk [vmem:[#allocation3 + $0x20] sm:$0xff] %vm248, 0.0
          %255 = vst.msk [vmem:[#allocation3 + $0x28] sm:$0x3f] %vm251, 0.0
          %v256 = vld [vmem:[#allocation2] sm:$0xff]
          %v257 = vld [vmem:[#allocation2 + $0x8] sm:$0xff]
          %v258 = vld [vmem:[#allocation2 + $0x10] sm:$0xff]
          %v259 = vld [vmem:[#allocation2 + $0x18] sm:$0xff]
          %264 = vrot.lane.b32.xlu0 %v256, 3
          %v265 = vpop.permute.xlu0 %264
          %266 = vrot.lane.b32.xlu0 %v257, 3
          %v267 = vpop.permute.xlu0 %266
          %268 = vrot.lane.b32.xlu0 %v258, 3
          %v269 = vpop.permute.xlu0 %268
          %270 = vrot.lane.b32.xlu0 %v259, 3
          %v271 = vpop.permute.xlu0 %270
          %vm276 = vcmask 154648
          %277 = vst.msk [vmem:[#allocation3 + $0x3] sm:$0xff] %vm276, %v265
          %278 = vst.msk [vmem:[#allocation3 + $0xb] sm:$0xff] %vm276, %v267
          %279 = vst.msk [vmem:[#allocation3 + $0x1b] sm:$0xff] %vm276, %v269
          %280 = vst.msk [vmem:[#allocation3 + $0x23] sm:$0xff] %vm276, %v271
          %v281 = vld [vmem:[#allocation3] sm:$0xff]
          %v282 = vld [vmem:[#allocation3 + $0x8] sm:$0xff]
          %v283 = vld [vmem:[#allocation3 + $0x10] sm:$0x3f]
          %v284 = vld [vmem:[#allocation3 + $0x18] sm:$0xff]
          %v285 = vld [vmem:[#allocation3 + $0x20] sm:$0xff]
          %v286 = vld [vmem:[#allocation3 + $0x28] sm:$0x3f]
          %s287 = sld [smem:[#allocation8]]
          %s288 = sld [smem:[#allocation8 + $0x1]]
          %s289 = sld [smem:[#allocation8 + $0x2]]
          %s290 = sld [smem:[#allocation8 + $0x3]]
          %s291 = sld [smem:[#allocation8 + $0x4]]
          %s292 = sld [smem:[#allocation8 + $0x5]]
          %s293 = sld [smem:[#allocation8 + $0x6]]
          %s294 = sld [smem:[#allocation8 + $0x7]]
          %s295 = sld [smem:[#allocation8 + $0x8]]
          %s296 = sld [smem:[#allocation8 + $0x9]]
          %s297 = sld [smem:[#allocation8 + $0xa]]
          %s298 = sld [smem:[#allocation8 + $0xb]]
          %s299 = sld [smem:[#allocation8 + $0xc]]
          %s300 = sld [smem:[#allocation8 + $0xd]]
          %s301 = sld [smem:[#allocation8 + $0xe]]
          %s302 = sld [smem:[#allocation8 + $0xf]]
          %s303 = sld [smem:[#allocation8 + $0x10]]
          %s304 = sld [smem:[#allocation8 + $0x11]]
          %s305 = sld [smem:[#allocation8 + $0x12]]
          %s306 = sld [smem:[#allocation8 + $0x13]]
          %s307 = sld [smem:[#allocation8 + $0x14]]
          %s308 = sld [smem:[#allocation8 + $0x15]]
          %s309 = sld [smem:[#allocation8 + $0x16]]
          %s310 = sld [smem:[#allocation8 + $0x17]]
          %s311 = sld [smem:[#allocation8 + $0x18]]
          %s312 = sld [smem:[#allocation8 + $0x19]]
          %s313 = sld [smem:[#allocation8 + $0x1a]]
          %s314 = sld [smem:[#allocation8 + $0x1b]]
          %s315 = sld [smem:[#allocation8 + $0x1c]]
          %s316 = sld [smem:[#allocation8 + $0x1d]]
          %s317 = sld [smem:[#allocation8 + $0x1e]]
          %s318 = sld [smem:[#allocation8 + $0x1f]]
          %s319 = sld [smem:[#allocation8 + $0x20]]
          %s320 = sld [smem:[#allocation8 + $0x21]]
          %s321 = sld [smem:[#allocation8 + $0x22]]
          %s322 = sld [smem:[#allocation8 + $0x23]]
          %s323 = sld [smem:[#allocation8 + $0x24]]
          %s324 = sld [smem:[#allocation8 + $0x25]]
          %s325 = sld [smem:[#allocation8 + $0x26]]
          %s326 = sld [smem:[#allocation8 + $0x27]]
          %s327 = sld [smem:[#allocation8 + $0x28]]
          %s328 = sld [smem:[#allocation8 + $0x29]]
          %s329 = sld [smem:[#allocation8 + $0x2a]]
          %s330 = sld [smem:[#allocation8 + $0x2b]]
          %s331 = sld [smem:[#allocation8 + $0x2c]]
          %s332 = sld [smem:[#allocation8 + $0x2d]]
          %s333 = sld [smem:[#allocation8 + $0x2e]]
          %s334 = sld [smem:[#allocation8 + $0x2f]]
          %s335 = sld [smem:[#allocation8 + $0x30]]
          %s336 = sld [smem:[#allocation8 + $0x31]]
          %s337 = sld [smem:[#allocation8 + $0x32]]
          %s338 = sld [smem:[#allocation8 + $0x33]]
          %s339 = sld [smem:[#allocation8 + $0x34]]
          %s340 = sld [smem:[#allocation8 + $0x35]]
          %s341 = sld [smem:[#allocation8 + $0x36]]
          %s342 = sld [smem:[#allocation8 + $0x37]]
          %s343 = sld [smem:[#allocation8 + $0x38]]
          %s344 = sld [smem:[#allocation8 + $0x39]]
          %s345 = sld [smem:[#allocation8 + $0x3a]]
          %s346 = sld [smem:[#allocation8 + $0x3b]]
          %s347 = sld [smem:[#allocation8 + $0x3c]]
          %s348 = sld [smem:[#allocation8 + $0x3d]]
          %s349 = sld [smem:[#allocation8 + $0x3e]]
          %s350 = sld [smem:[#allocation8 + $0x3f]]
          %s351 = sld [smem:[#allocation8 + $0x40]]
          %s352 = sld [smem:[#allocation8 + $0x41]]
          %s353 = sld [smem:[#allocation8 + $0x42]]
          %s354 = sld [smem:[#allocation8 + $0x43]]
          %s355 = sld [smem:[#allocation8 + $0x44]]
          %s356 = sld [smem:[#allocation8 + $0x45]]
          %s357 = sld [smem:[#allocation8 + $0x46]]
          %s358 = sld [smem:[#allocation8 + $0x47]]
          %s359 = sld [smem:[#allocation8 + $0x48]]
          %s360 = sld [smem:[#allocation8 + $0x49]]
          %s361 = sld [smem:[#allocation8 + $0x4a]]
          %s362 = sld [smem:[#allocation8 + $0x4b]]
          %s363 = sld [smem:[#allocation8 + $0x4c]]
          %s364 = sld [smem:[#allocation8 + $0x4d]]
          %s365 = sld [smem:[#allocation8 + $0x4e]]
          %s366 = sld [smem:[#allocation8 + $0x4f]]
          %s367 = sld [smem:[#allocation8 + $0x50]]
          %s368 = sld [smem:[#allocation8 + $0x51]]
          %s369 = sld [smem:[#allocation8 + $0x52]]
          %s370 = sld [smem:[#allocation8 + $0x53]]
          %s371 = sld [smem:[#allocation8 + $0x54]]
          %s372 = sld [smem:[#allocation8 + $0x55]]
          %s373 = sld [smem:[#allocation8 + $0x56]]
          %s374 = sld [smem:[#allocation8 + $0x57]]
          %s375 = sld [smem:[#allocation8 + $0x58]]
          %s376 = sld [smem:[#allocation8 + $0x59]]
          %s377 = sld [smem:[#allocation8 + $0x5a]]
          %s378 = sld [smem:[#allocation8 + $0x5b]]
          %s379 = sld [smem:[#allocation8 + $0x5c]]
          %s380 = sld [smem:[#allocation8 + $0x5d]]
          %s381 = sld [smem:[#allocation8 + $0x5e]]
          %s382 = sld [smem:[#allocation8 + $0x5f]]
          %s383 = sld [smem:[#allocation8 + $0x60]]
          %s384 = sld [smem:[#allocation8 + $0x61]]
          %v385 = vstv %s287
          %v386 = vmul.f32 %v385, %v281
          %v387 = vmul.f32 %v385, %v282
          %v388 = vadd.f32 %v386, 0.0
          %v389 = vadd.f32 %v387, 0.0
          %v390 = vstv %s288
          %v391 = vmul.f32 %v390, %v281
          %v392 = vmul.f32 %v390, %v282
          %v393 = vadd.f32 %v391, 0.0
          %v394 = vadd.f32 %v392, 0.0
          %v395 = vstv %s289
          %v396 = vmul.f32 %v395, %v281
          %v397 = vmul.f32 %v395, %v282
          %v398 = vadd.f32 %v396, 0.0
          %v399 = vadd.f32 %v397, 0.0
          %v400 = vstv %s290
          %v401 = vmul.f32 %v400, %v281
          %v402 = vmul.f32 %v400, %v282
          %v403 = vadd.f32 %v401, 0.0
          %v404 = vadd.f32 %v402, 0.0
          %v405 = vstv %s291
          %v406 = vmul.f32 %v405, %v281
          %v407 = vmul.f32 %v405, %v282
          %410 = vrot.lane.b32.xlu0 %v406, 124
          %v411 = vpop.permute.xlu0 %410
          %412 = vrot.lane.b32.xlu0 %v407, 124
          %v413 = vpop.permute.xlu0 %412
          %v416 = vadd.f32 %v388, %v411
          %v417 = vadd.f32 %v389, %v413
          %v418 = vstv %s292
          %v419 = vmul.f32 %v418, %v281
          %v420 = vmul.f32 %v418, %v282
          %423 = vrot.lane.b32.xlu0 %v419, 124
          %v424 = vpop.permute.xlu0 %423
          %425 = vrot.lane.b32.xlu0 %v420, 124
          %v426 = vpop.permute.xlu0 %425
          %v429 = vadd.f32 %v393, %v424
          %v430 = vadd.f32 %v394, %v426
          %v431 = vstv %s293
          %v432 = vmul.f32 %v431, %v281
          %v433 = vmul.f32 %v431, %v282
          %436 = vrot.lane.b32.xlu0 %v432, 124
          %v437 = vpop.permute.xlu0 %436
          %438 = vrot.lane.b32.xlu0 %v433, 124
          %v439 = vpop.permute.xlu0 %438
          %v442 = vadd.f32 %v398, %v437
          %v443 = vadd.f32 %v399, %v439
          %v444 = vstv %s294
          %v445 = vmul.f32 %v444, %v281
          %v446 = vmul.f32 %v444, %v282
          %v447 = vmul.f32 %v444, %v283
          %vm451 = vcmask 1046528
          %v452 = vrot.slane %v445, 1
          %v453 = vrot.slane %v446, 1
          %v454 = vsel %vm451, %v452, %v453
          %v455 = vrot.slane %v447, 1
          %v456 = vsel %vm451, %v453, %v455
          %457 = vrot.lane.b32.xlu0 %v454, 3
          %v458 = vpop.permute.xlu0 %457
          %459 = vrot.lane.b32.xlu0 %v456, 3
          %v460 = vpop.permute.xlu0 %459
          %v463 = vadd.f32 %v403, %v458
          %v464 = vadd.f32 %v404, %v460
          %v465 = vstv %s295
          %v466 = vmul.f32 %v465, %v281
          %v467 = vmul.f32 %v465, %v282
          %v468 = vmul.f32 %v465, %v283
          %v472 = vrot.slane %v466, 1
          %v473 = vrot.slane %v467, 1
          %v474 = vsel %vm451, %v472, %v473
          %v475 = vrot.slane %v468, 1
          %v476 = vsel %vm451, %v473, %v475
          %477 = vrot.lane.b32.xlu0 %v474, 127
          %v478 = vpop.permute.xlu0 %477
          %479 = vrot.lane.b32.xlu0 %v476, 127
          %v480 = vpop.permute.xlu0 %479
          %v483 = vadd.f32 %v416, %v478
          %v484 = vadd.f32 %v417, %v480
          %v485 = vstv %s296
          %v486 = vmul.f32 %v485, %v281
          %v487 = vmul.f32 %v485, %v282
          %v488 = vmul.f32 %v485, %v283
          %v492 = vrot.slane %v486, 1
          %v493 = vrot.slane %v487, 1
          %v494 = vsel %vm451, %v492, %v493
          %v495 = vrot.slane %v488, 1
          %v496 = vsel %vm451, %v493, %v495
          %497 = vrot.lane.b32.xlu0 %v494, 127
          %v498 = vpop.permute.xlu0 %497
          %499 = vrot.lane.b32.xlu0 %v496, 127
          %v500 = vpop.permute.xlu0 %499
          %v503 = vadd.f32 %v429, %v498
          %v504 = vadd.f32 %v430, %v500
          %v505 = vstv %s297
          %v506 = vmul.f32 %v505, %v281
          %v507 = vmul.f32 %v505, %v282
          %v508 = vmul.f32 %v505, %v283
          %v512 = vrot.slane %v506, 1
          %v513 = vrot.slane %v507, 1
          %v514 = vsel %vm451, %v512, %v513
          %v515 = vrot.slane %v508, 1
          %v516 = vsel %vm451, %v513, %v515
          %517 = vrot.lane.b32.xlu0 %v514, 127
          %v518 = vpop.permute.xlu0 %517
          %519 = vrot.lane.b32.xlu0 %v516, 127
          %v520 = vpop.permute.xlu0 %519
          %v523 = vadd.f32 %v442, %v518
          %v524 = vadd.f32 %v443, %v520
          %v525 = vstv %s298
          %v526 = vmul.f32 %v525, %v281
          %v527 = vmul.f32 %v525, %v282
          %v528 = vmul.f32 %v525, %v283
          %v532 = vrot.slane %v526, 1
          %v533 = vrot.slane %v527, 1
          %v534 = vsel %vm451, %v532, %v533
          %v535 = vrot.slane %v528, 1
          %v536 = vsel %vm451, %v533, %v535
          %537 = vrot.lane.b32.xlu0 %v534, 127
          %v538 = vpop.permute.xlu0 %537
          %539 = vrot.lane.b32.xlu0 %v536, 127
          %v540 = vpop.permute.xlu0 %539
          %v543 = vadd.f32 %v463, %v538
          %v544 = vadd.f32 %v464, %v540
          %v545 = vstv %s299
          %v546 = vmul.f32 %v545, %v281
          %v547 = vmul.f32 %v545, %v282
          %v548 = vmul.f32 %v545, %v283
          %v552 = vrot.slane %v546, 1
          %v553 = vrot.slane %v547, 1
          %v554 = vsel %vm451, %v552, %v553
          %v555 = vrot.slane %v548, 1
          %v556 = vsel %vm451, %v553, %v555
          %557 = vrot.lane.b32.xlu0 %v554, 123
          %v558 = vpop.permute.xlu0 %557
          %559 = vrot.lane.b32.xlu0 %v556, 123
          %v560 = vpop.permute.xlu0 %559
          %v563 = vadd.f32 %v483, %v558
          %v564 = vadd.f32 %v484, %v560
          %v565 = vstv %s300
          %v566 = vmul.f32 %v565, %v281
          %v567 = vmul.f32 %v565, %v282
          %v568 = vmul.f32 %v565, %v283
          %v572 = vrot.slane %v566, 1
          %v573 = vrot.slane %v567, 1
          %v574 = vsel %vm451, %v572, %v573
          %v575 = vrot.slane %v568, 1
          %v576 = vsel %vm451, %v573, %v575
          %577 = vrot.lane.b32.xlu0 %v574, 123
          %v578 = vpop.permute.xlu0 %577
          %579 = vrot.lane.b32.xlu0 %v576, 123
          %v580 = vpop.permute.xlu0 %579
          %v583 = vadd.f32 %v503, %v578
          %v584 = vadd.f32 %v504, %v580
          %v585 = vstv %s301
          %v586 = vmul.f32 %v585, %v281
          %v587 = vmul.f32 %v585, %v282
          %v588 = vmul.f32 %v585, %v283
          %vm592 = vcmask 1045504
          %v593 = vrot.slane %v586, 2
          %v594 = vrot.slane %v587, 2
          %v595 = vsel %vm592, %v593, %v594
          %v596 = vrot.slane %v588, 2
          %v597 = vsel %vm592, %v594, %v596
          %598 = vrot.lane.b32.xlu0 %v595, 2
          %v599 = vpop.permute.xlu0 %598
          %600 = vrot.lane.b32.xlu0 %v597, 2
          %v601 = vpop.permute.xlu0 %600
          %v604 = vadd.f32 %v523, %v599
          %v605 = vadd.f32 %v524, %v601
          %v606 = vstv %s302
          %v607 = vmul.f32 %v606, %v281
          %v608 = vmul.f32 %v606, %v282
          %v609 = vmul.f32 %v606, %v283
          %v613 = vrot.slane %v607, 2
          %v614 = vrot.slane %v608, 2
          %v615 = vsel %vm592, %v613, %v614
          %v616 = vrot.slane %v609, 2
          %v617 = vsel %vm592, %v614, %v616
          %618 = vrot.lane.b32.xlu0 %v615, 2
          %v619 = vpop.permute.xlu0 %618
          %620 = vrot.lane.b32.xlu0 %v617, 2
          %v621 = vpop.permute.xlu0 %620
          %v624 = vadd.f32 %v543, %v619
          %v625 = vadd.f32 %v544, %v621
          %v626 = vstv %s303
          %v627 = vmul.f32 %v626, %v281
          %v628 = vmul.f32 %v626, %v282
          %v629 = vmul.f32 %v626, %v283
          %v633 = vrot.slane %v627, 2
          %v634 = vrot.slane %v628, 2
          %v635 = vsel %vm592, %v633, %v634
          %v636 = vrot.slane %v629, 2
          %v637 = vsel %vm592, %v634, %v636
          %638 = vrot.lane.b32.xlu0 %v635, 126
          %v639 = vpop.permute.xlu0 %638
          %640 = vrot.lane.b32.xlu0 %v637, 126
          %v641 = vpop.permute.xlu0 %640
          %v644 = vadd.f32 %v563, %v639
          %v645 = vadd.f32 %v564, %v641
          %v646 = vstv %s304
          %v647 = vmul.f32 %v646, %v281
          %v648 = vmul.f32 %v646, %v282
          %v649 = vmul.f32 %v646, %v283
          %v653 = vrot.slane %v647, 2
          %v654 = vrot.slane %v648, 2
          %v655 = vsel %vm592, %v653, %v654
          %v656 = vrot.slane %v649, 2
          %v657 = vsel %vm592, %v654, %v656
          %658 = vrot.lane.b32.xlu0 %v655, 126
          %v659 = vpop.permute.xlu0 %658
          %660 = vrot.lane.b32.xlu0 %v657, 126
          %v661 = vpop.permute.xlu0 %660
          %v664 = vadd.f32 %v583, %v659
          %v665 = vadd.f32 %v584, %v661
          %v666 = vstv %s305
          %v667 = vmul.f32 %v666, %v281
          %v668 = vmul.f32 %v666, %v282
          %v669 = vmul.f32 %v666, %v283
          %v673 = vrot.slane %v667, 2
          %v674 = vrot.slane %v668, 2
          %v675 = vsel %vm592, %v673, %v674
          %v676 = vrot.slane %v669, 2
          %v677 = vsel %vm592, %v674, %v676
          %678 = vrot.lane.b32.xlu0 %v675, 126
          %v679 = vpop.permute.xlu0 %678
          %680 = vrot.lane.b32.xlu0 %v677, 126
          %v681 = vpop.permute.xlu0 %680
          %v684 = vadd.f32 %v604, %v679
          %v685 = vadd.f32 %v605, %v681
          %v686 = vstv %s306
          %v687 = vmul.f32 %v686, %v281
          %v688 = vmul.f32 %v686, %v282
          %v689 = vmul.f32 %v686, %v283
          %v693 = vrot.slane %v687, 2
          %v694 = vrot.slane %v688, 2
          %v695 = vsel %vm592, %v693, %v694
          %v696 = vrot.slane %v689, 2
          %v697 = vsel %vm592, %v694, %v696
          %698 = vrot.lane.b32.xlu0 %v695, 126
          %v699 = vpop.permute.xlu0 %698
          %700 = vrot.lane.b32.xlu0 %v697, 126
          %v701 = vpop.permute.xlu0 %700
          %v704 = vadd.f32 %v624, %v699
          %v705 = vadd.f32 %v625, %v701
          %v706 = vstv %s307
          %v707 = vmul.f32 %v706, %v281
          %v708 = vmul.f32 %v706, %v282
          %v709 = vmul.f32 %v706, %v283
          %v713 = vrot.slane %v707, 2
          %v714 = vrot.slane %v708, 2
          %v715 = vsel %vm592, %v713, %v714
          %v716 = vrot.slane %v709, 2
          %v717 = vsel %vm592, %v714, %v716
          %718 = vrot.lane.b32.xlu0 %v715, 122
          %v719 = vpop.permute.xlu0 %718
          %720 = vrot.lane.b32.xlu0 %v717, 122
          %v721 = vpop.permute.xlu0 %720
          %v724 = vadd.f32 %v644, %v719
          %v725 = vadd.f32 %v645, %v721
          %v726 = vstv %s308
          %v727 = vmul.f32 %v726, %v281
          %v728 = vmul.f32 %v726, %v282
          %v729 = vmul.f32 %v726, %v283
          %vm733 = vcmask 1044480
          %v734 = vrot.slane %v727, 3
          %v735 = vrot.slane %v728, 3
          %v736 = vsel %vm733, %v734, %v735
          %v737 = vrot.slane %v729, 3
          %v738 = vsel %vm733, %v735, %v737
          %739 = vrot.lane.b32.xlu0 %v736, 1
          %v740 = vpop.permute.xlu0 %739
          %741 = vrot.lane.b32.xlu0 %v738, 1
          %v742 = vpop.permute.xlu0 %741
          %v745 = vadd.f32 %v664, %v740
          %v746 = vadd.f32 %v665, %v742
          %v747 = vstv %s309
          %v748 = vmul.f32 %v747, %v281
          %v749 = vmul.f32 %v747, %v282
          %v750 = vmul.f32 %v747, %v283
          %v754 = vrot.slane %v748, 3
          %v755 = vrot.slane %v749, 3
          %v756 = vsel %vm733, %v754, %v755
          %v757 = vrot.slane %v750, 3
          %v758 = vsel %vm733, %v755, %v757
          %759 = vrot.lane.b32.xlu0 %v756, 1
          %v760 = vpop.permute.xlu0 %759
          %761 = vrot.lane.b32.xlu0 %v758, 1
          %v762 = vpop.permute.xlu0 %761
          %v765 = vadd.f32 %v684, %v760
          %v766 = vadd.f32 %v685, %v762
          %v767 = vstv %s310
          %v768 = vmul.f32 %v767, %v281
          %v769 = vmul.f32 %v767, %v282
          %v770 = vmul.f32 %v767, %v283
          %v774 = vrot.slane %v768, 3
          %v775 = vrot.slane %v769, 3
          %v776 = vsel %vm733, %v774, %v775
          %v777 = vrot.slane %v770, 3
          %v778 = vsel %vm733, %v775, %v777
          %779 = vrot.lane.b32.xlu0 %v776, 1
          %v780 = vpop.permute.xlu0 %779
          %781 = vrot.lane.b32.xlu0 %v778, 1
          %v782 = vpop.permute.xlu0 %781
          %v785 = vadd.f32 %v704, %v780
          %v786 = vadd.f32 %v705, %v782
          %v787 = vstv %s311
          %v788 = vmul.f32 %v787, %v281
          %v789 = vmul.f32 %v787, %v282
          %v790 = vmul.f32 %v787, %v283
          %v794 = vrot.slane %v788, 3
          %v795 = vrot.slane %v789, 3
          %v796 = vsel %vm733, %v794, %v795
          %v797 = vrot.slane %v790, 3
          %v798 = vsel %vm733, %v795, %v797
          %799 = vrot.lane.b32.xlu0 %v796, 125
          %v800 = vpop.permute.xlu0 %799
          %801 = vrot.lane.b32.xlu0 %v798, 125
          %v802 = vpop.permute.xlu0 %801
          %v805 = vadd.f32 %v724, %v800
          %v806 = vadd.f32 %v725, %v802
          %v807 = vstv %s312
          %v808 = vmul.f32 %v807, %v281
          %v809 = vmul.f32 %v807, %v282
          %v810 = vmul.f32 %v807, %v283
          %v814 = vrot.slane %v808, 3
          %v815 = vrot.slane %v809, 3
          %v816 = vsel %vm733, %v814, %v815
          %v817 = vrot.slane %v810, 3
          %v818 = vsel %vm733, %v815, %v817
          %819 = vrot.lane.b32.xlu0 %v816, 125
          %v820 = vpop.permute.xlu0 %819
          %821 = vrot.lane.b32.xlu0 %v818, 125
          %v822 = vpop.permute.xlu0 %821
          %v825 = vadd.f32 %v745, %v820
          %v826 = vadd.f32 %v746, %v822
          %v827 = vstv %s313
          %v828 = vmul.f32 %v827, %v281
          %v829 = vmul.f32 %v827, %v282
          %v830 = vmul.f32 %v827, %v283
          %v834 = vrot.slane %v828, 3
          %v835 = vrot.slane %v829, 3
          %v836 = vsel %vm733, %v834, %v835
          %v837 = vrot.slane %v830, 3
          %v838 = vsel %vm733, %v835, %v837
          %839 = vrot.lane.b32.xlu0 %v836, 125
          %v840 = vpop.permute.xlu0 %839
          %841 = vrot.lane.b32.xlu0 %v838, 125
          %v842 = vpop.permute.xlu0 %841
          %v845 = vadd.f32 %v765, %v840
          %v846 = vadd.f32 %v766, %v842
          %v847 = vstv %s314
          %v848 = vmul.f32 %v847, %v281
          %v849 = vmul.f32 %v847, %v282
          %v850 = vmul.f32 %v847, %v283
          %v854 = vrot.slane %v848, 3
          %v855 = vrot.slane %v849, 3
          %v856 = vsel %vm733, %v854, %v855
          %v857 = vrot.slane %v850, 3
          %v858 = vsel %vm733, %v855, %v857
          %859 = vrot.lane.b32.xlu0 %v856, 125
          %v860 = vpop.permute.xlu0 %859
          %861 = vrot.lane.b32.xlu0 %v858, 125
          %v862 = vpop.permute.xlu0 %861
          %v865 = vadd.f32 %v785, %v860
          %v866 = vadd.f32 %v786, %v862
          %v867 = vstv %s315
          %v868 = vmul.f32 %v867, %v281
          %v869 = vmul.f32 %v867, %v282
          %v870 = vmul.f32 %v867, %v283
          %vm874 = vcmask 1043456
          %v875 = vrot.slane %v868, 4
          %v876 = vrot.slane %v869, 4
          %v877 = vsel %vm874, %v875, %v876
          %v878 = vrot.slane %v870, 4
          %v879 = vsel %vm874, %v876, %v878
          %v882 = vadd.f32 %v805, %v877
          %v883 = vadd.f32 %v806, %v879
          %v884 = vstv %s316
          %v885 = vmul.f32 %v884, %v281
          %v886 = vmul.f32 %v884, %v282
          %v887 = vmul.f32 %v884, %v283
          %v891 = vrot.slane %v885, 4
          %v892 = vrot.slane %v886, 4
          %v893 = vsel %vm874, %v891, %v892
          %v894 = vrot.slane %v887, 4
          %v895 = vsel %vm874, %v892, %v894
          %v898 = vadd.f32 %v825, %v893
          %v899 = vadd.f32 %v826, %v895
          %v900 = vstv %s317
          %v901 = vmul.f32 %v900, %v281
          %v902 = vmul.f32 %v900, %v282
          %v903 = vmul.f32 %v900, %v283
          %v907 = vrot.slane %v901, 4
          %v908 = vrot.slane %v902, 4
          %v909 = vsel %vm874, %v907, %v908
          %v910 = vrot.slane %v903, 4
          %v911 = vsel %vm874, %v908, %v910
          %v914 = vadd.f32 %v845, %v909
          %v915 = vadd.f32 %v846, %v911
          %v916 = vstv %s318
          %v917 = vmul.f32 %v916, %v281
          %v918 = vmul.f32 %v916, %v282
          %v919 = vmul.f32 %v916, %v283
          %v923 = vrot.slane %v917, 4
          %v924 = vrot.slane %v918, 4
          %v925 = vsel %vm874, %v923, %v924
          %v926 = vrot.slane %v919, 4
          %v927 = vsel %vm874, %v924, %v926
          %v930 = vadd.f32 %v865, %v925
          %v931 = vadd.f32 %v866, %v927
          %v932 = vstv %s319
          %v933 = vmul.f32 %v932, %v281
          %v934 = vmul.f32 %v932, %v282
          %v935 = vmul.f32 %v932, %v283
          %v939 = vrot.slane %v933, 4
          %v940 = vrot.slane %v934, 4
          %v941 = vsel %vm874, %v939, %v940
          %v942 = vrot.slane %v935, 4
          %v943 = vsel %vm874, %v940, %v942
          %944 = vrot.lane.b32.xlu0 %v941, 124
          %v945 = vpop.permute.xlu0 %944
          %946 = vrot.lane.b32.xlu0 %v943, 124
          %v947 = vpop.permute.xlu0 %946
          %v950 = vadd.f32 %v882, %v945
          %v951 = vadd.f32 %v883, %v947
          %v952 = vstv %s320
          %v953 = vmul.f32 %v952, %v281
          %v954 = vmul.f32 %v952, %v282
          %v955 = vmul.f32 %v952, %v283
          %v959 = vrot.slane %v953, 4
          %v960 = vrot.slane %v954, 4
          %v961 = vsel %vm874, %v959, %v960
          %v962 = vrot.slane %v955, 4
          %v963 = vsel %vm874, %v960, %v962
          %964 = vrot.lane.b32.xlu0 %v961, 124
          %v965 = vpop.permute.xlu0 %964
          %966 = vrot.lane.b32.xlu0 %v963, 124
          %v967 = vpop.permute.xlu0 %966
          %v970 = vadd.f32 %v898, %v965
          %v971 = vadd.f32 %v899, %v967
          %v972 = vstv %s321
          %v973 = vmul.f32 %v972, %v281
          %v974 = vmul.f32 %v972, %v282
          %v975 = vmul.f32 %v972, %v283
          %v979 = vrot.slane %v973, 4
          %v980 = vrot.slane %v974, 4
          %v981 = vsel %vm874, %v979, %v980
          %v982 = vrot.slane %v975, 4
          %v983 = vsel %vm874, %v980, %v982
          %984 = vrot.lane.b32.xlu0 %v981, 124
          %v985 = vpop.permute.xlu0 %984
          %986 = vrot.lane.b32.xlu0 %v983, 124
          %v987 = vpop.permute.xlu0 %986
          %v990 = vadd.f32 %v914, %v985
          %v991 = vadd.f32 %v915, %v987
          %v992 = vstv %s322
          %v993 = vmul.f32 %v992, %v281
          %v994 = vmul.f32 %v992, %v282
          %v995 = vmul.f32 %v992, %v283
          %vm999 = vcmask 1042432
          %v1000 = vrot.slane %v993, 5
          %v1001 = vrot.slane %v994, 5
          %v1002 = vsel %vm999, %v1000, %v1001
          %v1003 = vrot.slane %v995, 5
          %v1004 = vsel %vm999, %v1001, %v1003
          %1005 = vrot.lane.b32.xlu0 %v1002, 3
          %v1006 = vpop.permute.xlu0 %1005
          %1007 = vrot.lane.b32.xlu0 %v1004, 3
          %v1008 = vpop.permute.xlu0 %1007
          %v1011 = vadd.f32 %v930, %v1006
          %v1012 = vadd.f32 %v931, %v1008
          %v1013 = vstv %s323
          %v1014 = vmul.f32 %v1013, %v281
          %v1015 = vmul.f32 %v1013, %v282
          %v1016 = vmul.f32 %v1013, %v283
          %v1020 = vrot.slane %v1014, 5
          %v1021 = vrot.slane %v1015, 5
          %v1022 = vsel %vm999, %v1020, %v1021
          %v1023 = vrot.slane %v1016, 5
          %v1024 = vsel %vm999, %v1021, %v1023
          %1025 = vrot.lane.b32.xlu0 %v1022, 127
          %v1026 = vpop.permute.xlu0 %1025
          %1027 = vrot.lane.b32.xlu0 %v1024, 127
          %v1028 = vpop.permute.xlu0 %1027
          %v1031 = vadd.f32 %v950, %v1026
          %v1032 = vadd.f32 %v951, %v1028
          %v1033 = vstv %s324
          %v1034 = vmul.f32 %v1033, %v281
          %v1035 = vmul.f32 %v1033, %v282
          %v1036 = vmul.f32 %v1033, %v283
          %v1040 = vrot.slane %v1034, 5
          %v1041 = vrot.slane %v1035, 5
          %v1042 = vsel %vm999, %v1040, %v1041
          %v1043 = vrot.slane %v1036, 5
          %v1044 = vsel %vm999, %v1041, %v1043
          %1045 = vrot.lane.b32.xlu0 %v1042, 127
          %v1046 = vpop.permute.xlu0 %1045
          %1047 = vrot.lane.b32.xlu0 %v1044, 127
          %v1048 = vpop.permute.xlu0 %1047
          %v1051 = vadd.f32 %v970, %v1046
          %v1052 = vadd.f32 %v971, %v1048
          %v1053 = vstv %s325
          %v1054 = vmul.f32 %v1053, %v281
          %v1055 = vmul.f32 %v1053, %v282
          %v1056 = vmul.f32 %v1053, %v283
          %v1060 = vrot.slane %v1054, 5
          %v1061 = vrot.slane %v1055, 5
          %v1062 = vsel %vm999, %v1060, %v1061
          %v1063 = vrot.slane %v1056, 5
          %v1064 = vsel %vm999, %v1061, %v1063
          %1065 = vrot.lane.b32.xlu0 %v1062, 127
          %v1066 = vpop.permute.xlu0 %1065
          %1067 = vrot.lane.b32.xlu0 %v1064, 127
          %v1068 = vpop.permute.xlu0 %1067
          %v1071 = vadd.f32 %v990, %v1066
          %v1072 = vadd.f32 %v991, %v1068
          %v1073 = vstv %s326
          %v1074 = vmul.f32 %v1073, %v281
          %v1075 = vmul.f32 %v1073, %v282
          %v1076 = vmul.f32 %v1073, %v283
          %v1080 = vrot.slane %v1074, 5
          %v1081 = vrot.slane %v1075, 5
          %v1082 = vsel %vm999, %v1080, %v1081
          %v1083 = vrot.slane %v1076, 5
          %v1084 = vsel %vm999, %v1081, %v1083
          %1085 = vrot.lane.b32.xlu0 %v1082, 127
          %v1086 = vpop.permute.xlu0 %1085
          %1087 = vrot.lane.b32.xlu0 %v1084, 127
          %v1088 = vpop.permute.xlu0 %1087
          %v1091 = vadd.f32 %v1011, %v1086
          %v1092 = vadd.f32 %v1012, %v1088
          %v1093 = vstv %s327
          %v1094 = vmul.f32 %v1093, %v281
          %v1095 = vmul.f32 %v1093, %v282
          %v1096 = vmul.f32 %v1093, %v283
          %v1100 = vrot.slane %v1094, 5
          %v1101 = vrot.slane %v1095, 5
          %v1102 = vsel %vm999, %v1100, %v1101
          %v1103 = vrot.slane %v1096, 5
          %v1104 = vsel %vm999, %v1101, %v1103
          %1105 = vrot.lane.b32.xlu0 %v1102, 123
          %v1106 = vpop.permute.xlu0 %1105
          %1107 = vrot.lane.b32.xlu0 %v1104, 123
          %v1108 = vpop.permute.xlu0 %1107
          %v1111 = vadd.f32 %v1031, %v1106
          %v1112 = vadd.f32 %v1032, %v1108
          %v1113 = vstv %s328
          %v1114 = vmul.f32 %v1113, %v281
          %v1115 = vmul.f32 %v1113, %v282
          %v1116 = vmul.f32 %v1113, %v283
          %v1120 = vrot.slane %v1114, 5
          %v1121 = vrot.slane %v1115, 5
          %v1122 = vsel %vm999, %v1120, %v1121
          %v1123 = vrot.slane %v1116, 5
          %v1124 = vsel %vm999, %v1121, %v1123
          %1125 = vrot.lane.b32.xlu0 %v1122, 123
          %v1126 = vpop.permute.xlu0 %1125
          %1127 = vrot.lane.b32.xlu0 %v1124, 123
          %v1128 = vpop.permute.xlu0 %1127
          %v1131 = vadd.f32 %v1051, %v1126
          %v1132 = vadd.f32 %v1052, %v1128
          %v1133 = vstv %s329
          %v1134 = vmul.f32 %v1133, %v281
          %v1135 = vmul.f32 %v1133, %v282
          %v1136 = vmul.f32 %v1133, %v283
          %vm1140 = vcmask 1041408
          %v1141 = vrot.slane %v1134, 6
          %v1142 = vrot.slane %v1135, 6
          %v1143 = vsel %vm1140, %v1141, %v1142
          %v1144 = vrot.slane %v1136, 6
          %v1145 = vsel %vm1140, %v1142, %v1144
          %1146 = vrot.lane.b32.xlu0 %v1143, 2
          %v1147 = vpop.permute.xlu0 %1146
          %1148 = vrot.lane.b32.xlu0 %v1145, 2
          %v1149 = vpop.permute.xlu0 %1148
          %v1152 = vadd.f32 %v1071, %v1147
          %v1153 = vadd.f32 %v1072, %v1149
          %v1154 = vstv %s330
          %v1155 = vmul.f32 %v1154, %v281
          %v1156 = vmul.f32 %v1154, %v282
          %v1157 = vmul.f32 %v1154, %v283
          %v1161 = vrot.slane %v1155, 6
          %v1162 = vrot.slane %v1156, 6
          %v1163 = vsel %vm1140, %v1161, %v1162
          %v1164 = vrot.slane %v1157, 6
          %v1165 = vsel %vm1140, %v1162, %v1164
          %1166 = vrot.lane.b32.xlu0 %v1163, 2
          %v1167 = vpop.permute.xlu0 %1166
          %1168 = vrot.lane.b32.xlu0 %v1165, 2
          %v1169 = vpop.permute.xlu0 %1168
          %v1172 = vadd.f32 %v1091, %v1167
          %v1173 = vadd.f32 %v1092, %v1169
          %v1174 = vstv %s331
          %v1175 = vmul.f32 %v1174, %v281
          %v1176 = vmul.f32 %v1174, %v282
          %v1177 = vmul.f32 %v1174, %v283
          %v1181 = vrot.slane %v1175, 6
          %v1182 = vrot.slane %v1176, 6
          %v1183 = vsel %vm1140, %v1181, %v1182
          %v1184 = vrot.slane %v1177, 6
          %v1185 = vsel %vm1140, %v1182, %v1184
          %1186 = vrot.lane.b32.xlu0 %v1183, 126
          %v1187 = vpop.permute.xlu0 %1186
          %1188 = vrot.lane.b32.xlu0 %v1185, 126
          %v1189 = vpop.permute.xlu0 %1188
          %v1192 = vadd.f32 %v1111, %v1187
          %v1193 = vadd.f32 %v1112, %v1189
          %v1194 = vstv %s332
          %v1195 = vmul.f32 %v1194, %v281
          %v1196 = vmul.f32 %v1194, %v282
          %v1197 = vmul.f32 %v1194, %v283
          %v1201 = vrot.slane %v1195, 6
          %v1202 = vrot.slane %v1196, 6
          %v1203 = vsel %vm1140, %v1201, %v1202
          %v1204 = vrot.slane %v1197, 6
          %v1205 = vsel %vm1140, %v1202, %v1204
          %1206 = vrot.lane.b32.xlu0 %v1203, 126
          %v1207 = vpop.permute.xlu0 %1206
          %1208 = vrot.lane.b32.xlu0 %v1205, 126
          %v1209 = vpop.permute.xlu0 %1208
          %v1212 = vadd.f32 %v1131, %v1207
          %v1213 = vadd.f32 %v1132, %v1209
          %v1214 = vstv %s333
          %v1215 = vmul.f32 %v1214, %v281
          %v1216 = vmul.f32 %v1214, %v282
          %v1217 = vmul.f32 %v1214, %v283
          %v1221 = vrot.slane %v1215, 6
          %v1222 = vrot.slane %v1216, 6
          %v1223 = vsel %vm1140, %v1221, %v1222
          %v1224 = vrot.slane %v1217, 6
          %v1225 = vsel %vm1140, %v1222, %v1224
          %1226 = vrot.lane.b32.xlu0 %v1223, 126
          %v1227 = vpop.permute.xlu0 %1226
          %1228 = vrot.lane.b32.xlu0 %v1225, 126
          %v1229 = vpop.permute.xlu0 %1228
          %v1232 = vadd.f32 %v1152, %v1227
          %v1233 = vadd.f32 %v1153, %v1229
          %v1234 = vstv %s334
          %v1235 = vmul.f32 %v1234, %v281
          %v1236 = vmul.f32 %v1234, %v282
          %v1237 = vmul.f32 %v1234, %v283
          %v1241 = vrot.slane %v1235, 6
          %v1242 = vrot.slane %v1236, 6
          %v1243 = vsel %vm1140, %v1241, %v1242
          %v1244 = vrot.slane %v1237, 6
          %v1245 = vsel %vm1140, %v1242, %v1244
          %1246 = vrot.lane.b32.xlu0 %v1243, 126
          %v1247 = vpop.permute.xlu0 %1246
          %1248 = vrot.lane.b32.xlu0 %v1245, 126
          %v1249 = vpop.permute.xlu0 %1248
          %v1252 = vadd.f32 %v1172, %v1247
          %v1253 = vadd.f32 %v1173, %v1249
          %v1254 = vstv %s335
          %v1255 = vmul.f32 %v1254, %v281
          %v1256 = vmul.f32 %v1254, %v282
          %v1257 = vmul.f32 %v1254, %v283
          %v1261 = vrot.slane %v1255, 6
          %v1262 = vrot.slane %v1256, 6
          %v1263 = vsel %vm1140, %v1261, %v1262
          %v1264 = vrot.slane %v1257, 6
          %v1265 = vsel %vm1140, %v1262, %v1264
          %1266 = vrot.lane.b32.xlu0 %v1263, 122
          %v1267 = vpop.permute.xlu0 %1266
          %1268 = vrot.lane.b32.xlu0 %v1265, 122
          %v1269 = vpop.permute.xlu0 %1268
          %v1272 = vadd.f32 %v1192, %v1267
          %v1273 = vadd.f32 %v1193, %v1269
          %v1274 = vstv %s336
          %v1275 = vmul.f32 %v1274, %v284
          %v1276 = vmul.f32 %v1274, %v285
          %1279 = vrot.lane.b32.xlu0 %v1275, 1
          %v1280 = vpop.permute.xlu0 %1279
          %1281 = vrot.lane.b32.xlu0 %v1276, 1
          %v1282 = vpop.permute.xlu0 %1281
          %v1285 = vadd.f32 %v1212, %v1280
          %v1286 = vadd.f32 %v1213, %v1282
          %v1287 = vstv %s337
          %v1288 = vmul.f32 %v1287, %v284
          %v1289 = vmul.f32 %v1287, %v285
          %1292 = vrot.lane.b32.xlu0 %v1288, 1
          %v1293 = vpop.permute.xlu0 %1292
          %1294 = vrot.lane.b32.xlu0 %v1289, 1
          %v1295 = vpop.permute.xlu0 %1294
          %v1298 = vadd.f32 %v1232, %v1293
          %v1299 = vadd.f32 %v1233, %v1295
          %v1300 = vstv %s338
          %v1301 = vmul.f32 %v1300, %v284
          %v1302 = vmul.f32 %v1300, %v285
          %1305 = vrot.lane.b32.xlu0 %v1301, 1
          %v1306 = vpop.permute.xlu0 %1305
          %1307 = vrot.lane.b32.xlu0 %v1302, 1
          %v1308 = vpop.permute.xlu0 %1307
          %v1311 = vadd.f32 %v1252, %v1306
          %v1312 = vadd.f32 %v1253, %v1308
          %v1313 = vstv %s339
          %v1314 = vmul.f32 %v1313, %v284
          %v1315 = vmul.f32 %v1313, %v285
          %1318 = vrot.lane.b32.xlu0 %v1314, 125
          %v1319 = vpop.permute.xlu0 %1318
          %1320 = vrot.lane.b32.xlu0 %v1315, 125
          %v1321 = vpop.permute.xlu0 %1320
          %v1324 = vadd.f32 %v1272, %v1319
          %v1325 = vadd.f32 %v1273, %v1321
          %v1326 = vstv %s340
          %v1327 = vmul.f32 %v1326, %v284
          %v1328 = vmul.f32 %v1326, %v285
          %1331 = vrot.lane.b32.xlu0 %v1327, 125
          %v1332 = vpop.permute.xlu0 %1331
          %1333 = vrot.lane.b32.xlu0 %v1328, 125
          %v1334 = vpop.permute.xlu0 %1333
          %v1337 = vadd.f32 %v1285, %v1332
          %v1338 = vadd.f32 %v1286, %v1334
          %v1339 = vstv %s341
          %v1340 = vmul.f32 %v1339, %v284
          %v1341 = vmul.f32 %v1339, %v285
          %1344 = vrot.lane.b32.xlu0 %v1340, 125
          %v1345 = vpop.permute.xlu0 %1344
          %1346 = vrot.lane.b32.xlu0 %v1341, 125
          %v1347 = vpop.permute.xlu0 %1346
          %v1350 = vadd.f32 %v1298, %v1345
          %v1351 = vadd.f32 %v1299, %v1347
          %v1352 = vstv %s342
          %v1353 = vmul.f32 %v1352, %v284
          %v1354 = vmul.f32 %v1352, %v285
          %1357 = vrot.lane.b32.xlu0 %v1353, 125
          %v1358 = vpop.permute.xlu0 %1357
          %1359 = vrot.lane.b32.xlu0 %v1354, 125
          %v1360 = vpop.permute.xlu0 %1359
          %v1363 = vadd.f32 %v1311, %v1358
          %v1364 = vadd.f32 %v1312, %v1360
          %v1365 = vstv %s343
          %v1366 = vmul.f32 %v1365, %v284
          %v1367 = vmul.f32 %v1365, %v285
          %v1368 = vmul.f32 %v1365, %v286
          %v1372 = vrot.slane %v1366, 1
          %v1373 = vrot.slane %v1367, 1
          %v1374 = vsel %vm451, %v1372, %v1373
          %v1375 = vrot.slane %v1368, 1
          %v1376 = vsel %vm451, %v1373, %v1375
          %v1379 = vadd.f32 %v1324, %v1374
          %v1380 = vadd.f32 %v1325, %v1376
          %v1381 = vstv %s344
          %v1382 = vmul.f32 %v1381, %v284
          %v1383 = vmul.f32 %v1381, %v285
          %v1384 = vmul.f32 %v1381, %v286
          %v1388 = vrot.slane %v1382, 1
          %v1389 = vrot.slane %v1383, 1
          %v1390 = vsel %vm451, %v1388, %v1389
          %v1391 = vrot.slane %v1384, 1
          %v1392 = vsel %vm451, %v1389, %v1391
          %v1395 = vadd.f32 %v1337, %v1390
          %v1396 = vadd.f32 %v1338, %v1392
          %v1397 = vstv %s345
          %v1398 = vmul.f32 %v1397, %v284
          %v1399 = vmul.f32 %v1397, %v285
          %v1400 = vmul.f32 %v1397, %v286
          %v1404 = vrot.slane %v1398, 1
          %v1405 = vrot.slane %v1399, 1
          %v1406 = vsel %vm451, %v1404, %v1405
          %v1407 = vrot.slane %v1400, 1
          %v1408 = vsel %vm451, %v1405, %v1407
          %v1411 = vadd.f32 %v1350, %v1406
          %v1412 = vadd.f32 %v1351, %v1408
          %v1413 = vstv %s346
          %v1414 = vmul.f32 %v1413, %v284
          %v1415 = vmul.f32 %v1413, %v285
          %v1416 = vmul.f32 %v1413, %v286
          %v1420 = vrot.slane %v1414, 1
          %v1421 = vrot.slane %v1415, 1
          %v1422 = vsel %vm451, %v1420, %v1421
          %v1423 = vrot.slane %v1416, 1
          %v1424 = vsel %vm451, %v1421, %v1423
          %v1427 = vadd.f32 %v1363, %v1422
          %v1428 = vadd.f32 %v1364, %v1424
          %v1429 = vstv %s347
          %v1430 = vmul.f32 %v1429, %v284
          %v1431 = vmul.f32 %v1429, %v285
          %v1432 = vmul.f32 %v1429, %v286
          %v1436 = vrot.slane %v1430, 1
          %v1437 = vrot.slane %v1431, 1
          %v1438 = vsel %vm451, %v1436, %v1437
          %v1439 = vrot.slane %v1432, 1
          %v1440 = vsel %vm451, %v1437, %v1439
          %1441 = vrot.lane.b32.xlu0 %v1438, 124
          %v1442 = vpop.permute.xlu0 %1441
          %1443 = vrot.lane.b32.xlu0 %v1440, 124
          %v1444 = vpop.permute.xlu0 %1443
          %v1447 = vadd.f32 %v1379, %v1442
          %v1448 = vadd.f32 %v1380, %v1444
          %v1449 = vstv %s348
          %v1450 = vmul.f32 %v1449, %v284
          %v1451 = vmul.f32 %v1449, %v285
          %v1452 = vmul.f32 %v1449, %v286
          %v1456 = vrot.slane %v1450, 1
          %v1457 = vrot.slane %v1451, 1
          %v1458 = vsel %vm451, %v1456, %v1457
          %v1459 = vrot.slane %v1452, 1
          %v1460 = vsel %vm451, %v1457, %v1459
          %1461 = vrot.lane.b32.xlu0 %v1458, 124
          %v1462 = vpop.permute.xlu0 %1461
          %1463 = vrot.lane.b32.xlu0 %v1460, 124
          %v1464 = vpop.permute.xlu0 %1463
          %v1467 = vadd.f32 %v1395, %v1462
          %v1468 = vadd.f32 %v1396, %v1464
          %v1469 = vstv %s349
          %v1470 = vmul.f32 %v1469, %v284
          %v1471 = vmul.f32 %v1469, %v285
          %v1472 = vmul.f32 %v1469, %v286
          %v1476 = vrot.slane %v1470, 1
          %v1477 = vrot.slane %v1471, 1
          %v1478 = vsel %vm451, %v1476, %v1477
          %v1479 = vrot.slane %v1472, 1
          %v1480 = vsel %vm451, %v1477, %v1479
          %1481 = vrot.lane.b32.xlu0 %v1478, 124
          %v1482 = vpop.permute.xlu0 %1481
          %1483 = vrot.lane.b32.xlu0 %v1480, 124
          %v1484 = vpop.permute.xlu0 %1483
          %v1487 = vadd.f32 %v1411, %v1482
          %v1488 = vadd.f32 %v1412, %v1484
          %v1489 = vstv %s350
          %v1490 = vmul.f32 %v1489, %v284
          %v1491 = vmul.f32 %v1489, %v285
          %v1492 = vmul.f32 %v1489, %v286
          %v1496 = vrot.slane %v1490, 2
          %v1497 = vrot.slane %v1491, 2
          %v1498 = vsel %vm592, %v1496, %v1497
          %v1499 = vrot.slane %v1492, 2
          %v1500 = vsel %vm592, %v1497, %v1499
          %1501 = vrot.lane.b32.xlu0 %v1498, 3
          %v1502 = vpop.permute.xlu0 %1501
          %1503 = vrot.lane.b32.xlu0 %v1500, 3
          %v1504 = vpop.permute.xlu0 %1503
          %v1507 = vadd.f32 %v1427, %v1502
          %v1508 = vadd.f32 %v1428, %v1504
          %v1509 = vstv %s351
          %v1510 = vmul.f32 %v1509, %v284
          %v1511 = vmul.f32 %v1509, %v285
          %v1512 = vmul.f32 %v1509, %v286
          %v1516 = vrot.slane %v1510, 2
          %v1517 = vrot.slane %v1511, 2
          %v1518 = vsel %vm592, %v1516, %v1517
          %v1519 = vrot.slane %v1512, 2
          %v1520 = vsel %vm592, %v1517, %v1519
          %1521 = vrot.lane.b32.xlu0 %v1518, 127
          %v1522 = vpop.permute.xlu0 %1521
          %1523 = vrot.lane.b32.xlu0 %v1520, 127
          %v1524 = vpop.permute.xlu0 %1523
          %v1527 = vadd.f32 %v1447, %v1522
          %v1528 = vadd.f32 %v1448, %v1524
          %v1529 = vstv %s352
          %v1530 = vmul.f32 %v1529, %v284
          %v1531 = vmul.f32 %v1529, %v285
          %v1532 = vmul.f32 %v1529, %v286
          %v1536 = vrot.slane %v1530, 2
          %v1537 = vrot.slane %v1531, 2
          %v1538 = vsel %vm592, %v1536, %v1537
          %v1539 = vrot.slane %v1532, 2
          %v1540 = vsel %vm592, %v1537, %v1539
          %1541 = vrot.lane.b32.xlu0 %v1538, 127
          %v1542 = vpop.permute.xlu0 %1541
          %1543 = vrot.lane.b32.xlu0 %v1540, 127
          %v1544 = vpop.permute.xlu0 %1543
          %v1547 = vadd.f32 %v1467, %v1542
          %v1548 = vadd.f32 %v1468, %v1544
          %v1549 = vstv %s353
          %v1550 = vmul.f32 %v1549, %v284
          %v1551 = vmul.f32 %v1549, %v285
          %v1552 = vmul.f32 %v1549, %v286
          %v1556 = vrot.slane %v1550, 2
          %v1557 = vrot.slane %v1551, 2
          %v1558 = vsel %vm592, %v1556, %v1557
          %v1559 = vrot.slane %v1552, 2
          %v1560 = vsel %vm592, %v1557, %v1559
          %1561 = vrot.lane.b32.xlu0 %v1558, 127
          %v1562 = vpop.permute.xlu0 %1561
          %1563 = vrot.lane.b32.xlu0 %v1560, 127
          %v1564 = vpop.permute.xlu0 %1563
          %v1567 = vadd.f32 %v1487, %v1562
          %v1568 = vadd.f32 %v1488, %v1564
          %v1569 = vstv %s354
          %v1570 = vmul.f32 %v1569, %v284
          %v1571 = vmul.f32 %v1569, %v285
          %v1572 = vmul.f32 %v1569, %v286
          %v1576 = vrot.slane %v1570, 2
          %v1577 = vrot.slane %v1571, 2
          %v1578 = vsel %vm592, %v1576, %v1577
          %v1579 = vrot.slane %v1572, 2
          %v1580 = vsel %vm592, %v1577, %v1579
          %1581 = vrot.lane.b32.xlu0 %v1578, 127
          %v1582 = vpop.permute.xlu0 %1581
          %1583 = vrot.lane.b32.xlu0 %v1580, 127
          %v1584 = vpop.permute.xlu0 %1583
          %v1587 = vadd.f32 %v1507, %v1582
          %v1588 = vadd.f32 %v1508, %v1584
          %v1589 = vstv %s355
          %v1590 = vmul.f32 %v1589, %v284
          %v1591 = vmul.f32 %v1589, %v285
          %v1592 = vmul.f32 %v1589, %v286
          %v1596 = vrot.slane %v1590, 2
          %v1597 = vrot.slane %v1591, 2
          %v1598 = vsel %vm592, %v1596, %v1597
          %v1599 = vrot.slane %v1592, 2
          %v1600 = vsel %vm592, %v1597, %v1599
          %1601 = vrot.lane.b32.xlu0 %v1598, 123
          %v1602 = vpop.permute.xlu0 %1601
          %1603 = vrot.lane.b32.xlu0 %v1600, 123
          %v1604 = vpop.permute.xlu0 %1603
          %v1607 = vadd.f32 %v1527, %v1602
          %v1608 = vadd.f32 %v1528, %v1604
          %v1609 = vstv %s356
          %v1610 = vmul.f32 %v1609, %v284
          %v1611 = vmul.f32 %v1609, %v285
          %v1612 = vmul.f32 %v1609, %v286
          %v1616 = vrot.slane %v1610, 2
          %v1617 = vrot.slane %v1611, 2
          %v1618 = vsel %vm592, %v1616, %v1617
          %v1619 = vrot.slane %v1612, 2
          %v1620 = vsel %vm592, %v1617, %v1619
          %1621 = vrot.lane.b32.xlu0 %v1618, 123
          %v1622 = vpop.permute.xlu0 %1621
          %1623 = vrot.lane.b32.xlu0 %v1620, 123
          %v1624 = vpop.permute.xlu0 %1623
          %v1627 = vadd.f32 %v1547, %v1622
          %v1628 = vadd.f32 %v1548, %v1624
          %v1629 = vstv %s357
          %v1630 = vmul.f32 %v1629, %v284
          %v1631 = vmul.f32 %v1629, %v285
          %v1632 = vmul.f32 %v1629, %v286
          %v1636 = vrot.slane %v1630, 3
          %v1637 = vrot.slane %v1631, 3
          %v1638 = vsel %vm733, %v1636, %v1637
          %v1639 = vrot.slane %v1632, 3
          %v1640 = vsel %vm733, %v1637, %v1639
          %1641 = vrot.lane.b32.xlu0 %v1638, 2
          %v1642 = vpop.permute.xlu0 %1641
          %1643 = vrot.lane.b32.xlu0 %v1640, 2
          %v1644 = vpop.permute.xlu0 %1643
          %v1647 = vadd.f32 %v1567, %v1642
          %v1648 = vadd.f32 %v1568, %v1644
          %v1649 = vstv %s358
          %v1650 = vmul.f32 %v1649, %v284
          %v1651 = vmul.f32 %v1649, %v285
          %v1652 = vmul.f32 %v1649, %v286
          %v1656 = vrot.slane %v1650, 3
          %v1657 = vrot.slane %v1651, 3
          %v1658 = vsel %vm733, %v1656, %v1657
          %v1659 = vrot.slane %v1652, 3
          %v1660 = vsel %vm733, %v1657, %v1659
          %1661 = vrot.lane.b32.xlu0 %v1658, 2
          %v1662 = vpop.permute.xlu0 %1661
          %1663 = vrot.lane.b32.xlu0 %v1660, 2
          %v1664 = vpop.permute.xlu0 %1663
          %v1667 = vadd.f32 %v1587, %v1662
          %v1668 = vadd.f32 %v1588, %v1664
          %v1669 = vstv %s359
          %v1670 = vmul.f32 %v1669, %v284
          %v1671 = vmul.f32 %v1669, %v285
          %v1672 = vmul.f32 %v1669, %v286
          %v1676 = vrot.slane %v1670, 3
          %v1677 = vrot.slane %v1671, 3
          %v1678 = vsel %vm733, %v1676, %v1677
          %v1679 = vrot.slane %v1672, 3
          %v1680 = vsel %vm733, %v1677, %v1679
          %1681 = vrot.lane.b32.xlu0 %v1678, 126
          %v1682 = vpop.permute.xlu0 %1681
          %1683 = vrot.lane.b32.xlu0 %v1680, 126
          %v1684 = vpop.permute.xlu0 %1683
          %v1687 = vadd.f32 %v1607, %v1682
          %v1688 = vadd.f32 %v1608, %v1684
          %v1689 = vstv %s360
          %v1690 = vmul.f32 %v1689, %v284
          %v1691 = vmul.f32 %v1689, %v285
          %v1692 = vmul.f32 %v1689, %v286
          %v1696 = vrot.slane %v1690, 3
          %v1697 = vrot.slane %v1691, 3
          %v1698 = vsel %vm733, %v1696, %v1697
          %v1699 = vrot.slane %v1692, 3
          %v1700 = vsel %vm733, %v1697, %v1699
          %1701 = vrot.lane.b32.xlu0 %v1698, 126
          %v1702 = vpop.permute.xlu0 %1701
          %1703 = vrot.lane.b32.xlu0 %v1700, 126
          %v1704 = vpop.permute.xlu0 %1703
          %v1707 = vadd.f32 %v1627, %v1702
          %v1708 = vadd.f32 %v1628, %v1704
          %v1709 = vstv %s361
          %v1710 = vmul.f32 %v1709, %v284
          %v1711 = vmul.f32 %v1709, %v285
          %v1712 = vmul.f32 %v1709, %v286
          %v1716 = vrot.slane %v1710, 3
          %v1717 = vrot.slane %v1711, 3
          %v1718 = vsel %vm733, %v1716, %v1717
          %v1719 = vrot.slane %v1712, 3
          %v1720 = vsel %vm733, %v1717, %v1719
          %1721 = vrot.lane.b32.xlu0 %v1718, 126
          %v1722 = vpop.permute.xlu0 %1721
          %1723 = vrot.lane.b32.xlu0 %v1720, 126
          %v1724 = vpop.permute.xlu0 %1723
          %v1727 = vadd.f32 %v1647, %v1722
          %v1728 = vadd.f32 %v1648, %v1724
          %v1729 = vstv %s362
          %v1730 = vmul.f32 %v1729, %v284
          %v1731 = vmul.f32 %v1729, %v285
          %v1732 = vmul.f32 %v1729, %v286
          %v1736 = vrot.slane %v1730, 3
          %v1737 = vrot.slane %v1731, 3
          %v1738 = vsel %vm733, %v1736, %v1737
          %v1739 = vrot.slane %v1732, 3
          %v1740 = vsel %vm733, %v1737, %v1739
          %1741 = vrot.lane.b32.xlu0 %v1738, 126
          %v1742 = vpop.permute.xlu0 %1741
          %1743 = vrot.lane.b32.xlu0 %v1740, 126
          %v1744 = vpop.permute.xlu0 %1743
          %v1747 = vadd.f32 %v1667, %v1742
          %v1748 = vadd.f32 %v1668, %v1744
          %v1749 = vstv %s363
          %v1750 = vmul.f32 %v1749, %v284
          %v1751 = vmul.f32 %v1749, %v285
          %v1752 = vmul.f32 %v1749, %v286
          %v1756 = vrot.slane %v1750, 3
          %v1757 = vrot.slane %v1751, 3
          %v1758 = vsel %vm733, %v1756, %v1757
          %v1759 = vrot.slane %v1752, 3
          %v1760 = vsel %vm733, %v1757, %v1759
          %1761 = vrot.lane.b32.xlu0 %v1758, 122
          %v1762 = vpop.permute.xlu0 %1761
          %1763 = vrot.lane.b32.xlu0 %v1760, 122
          %v1764 = vpop.permute.xlu0 %1763
          %v1767 = vadd.f32 %v1687, %v1762
          %v1768 = vadd.f32 %v1688, %v1764
          %v1769 = vstv %s364
          %v1770 = vmul.f32 %v1769, %v284
          %v1771 = vmul.f32 %v1769, %v285
          %v1772 = vmul.f32 %v1769, %v286
          %v1776 = vrot.slane %v1770, 4
          %v1777 = vrot.slane %v1771, 4
          %v1778 = vsel %vm874, %v1776, %v1777
          %v1779 = vrot.slane %v1772, 4
          %v1780 = vsel %vm874, %v1777, %v1779
          %1781 = vrot.lane.b32.xlu0 %v1778, 1
          %v1782 = vpop.permute.xlu0 %1781
          %1783 = vrot.lane.b32.xlu0 %v1780, 1
          %v1784 = vpop.permute.xlu0 %1783
          %v1787 = vadd.f32 %v1707, %v1782
          %v1788 = vadd.f32 %v1708, %v1784
          %v1789 = vstv %s365
          %v1790 = vmul.f32 %v1789, %v284
          %v1791 = vmul.f32 %v1789, %v285
          %v1792 = vmul.f32 %v1789, %v286
          %v1796 = vrot.slane %v1790, 4
          %v1797 = vrot.slane %v1791, 4
          %v1798 = vsel %vm874, %v1796, %v1797
          %v1799 = vrot.slane %v1792, 4
          %v1800 = vsel %vm874, %v1797, %v1799
          %1801 = vrot.lane.b32.xlu0 %v1798, 1
          %v1802 = vpop.permute.xlu0 %1801
          %1803 = vrot.lane.b32.xlu0 %v1800, 1
          %v1804 = vpop.permute.xlu0 %1803
          %v1807 = vadd.f32 %v1727, %v1802
          %v1808 = vadd.f32 %v1728, %v1804
          %v1809 = vstv %s366
          %v1810 = vmul.f32 %v1809, %v284
          %v1811 = vmul.f32 %v1809, %v285
          %v1812 = vmul.f32 %v1809, %v286
          %v1816 = vrot.slane %v1810, 4
          %v1817 = vrot.slane %v1811, 4
          %v1818 = vsel %vm874, %v1816, %v1817
          %v1819 = vrot.slane %v1812, 4
          %v1820 = vsel %vm874, %v1817, %v1819
          %1821 = vrot.lane.b32.xlu0 %v1818, 1
          %v1822 = vpop.permute.xlu0 %1821
          %1823 = vrot.lane.b32.xlu0 %v1820, 1
          %v1824 = vpop.permute.xlu0 %1823
          %v1827 = vadd.f32 %v1747, %v1822
          %v1828 = vadd.f32 %v1748, %v1824
          %v1829 = vstv %s367
          %v1830 = vmul.f32 %v1829, %v284
          %v1831 = vmul.f32 %v1829, %v285
          %v1832 = vmul.f32 %v1829, %v286
          %v1836 = vrot.slane %v1830, 4
          %v1837 = vrot.slane %v1831, 4
          %v1838 = vsel %vm874, %v1836, %v1837
          %v1839 = vrot.slane %v1832, 4
          %v1840 = vsel %vm874, %v1837, %v1839
          %1841 = vrot.lane.b32.xlu0 %v1838, 125
          %v1842 = vpop.permute.xlu0 %1841
          %1843 = vrot.lane.b32.xlu0 %v1840, 125
          %v1844 = vpop.permute.xlu0 %1843
          %v1847 = vadd.f32 %v1767, %v1842
          %v1848 = vadd.f32 %v1768, %v1844
          %v1849 = vstv %s368
          %v1850 = vmul.f32 %v1849, %v284
          %v1851 = vmul.f32 %v1849, %v285
          %v1852 = vmul.f32 %v1849, %v286
          %v1856 = vrot.slane %v1850, 4
          %v1857 = vrot.slane %v1851, 4
          %v1858 = vsel %vm874, %v1856, %v1857
          %v1859 = vrot.slane %v1852, 4
          %v1860 = vsel %vm874, %v1857, %v1859
          %1861 = vrot.lane.b32.xlu0 %v1858, 125
          %v1862 = vpop.permute.xlu0 %1861
          %1863 = vrot.lane.b32.xlu0 %v1860, 125
          %v1864 = vpop.permute.xlu0 %1863
          %v1867 = vadd.f32 %v1787, %v1862
          %v1868 = vadd.f32 %v1788, %v1864
          %v1869 = vstv %s369
          %v1870 = vmul.f32 %v1869, %v284
          %v1871 = vmul.f32 %v1869, %v285
          %v1872 = vmul.f32 %v1869, %v286
          %v1876 = vrot.slane %v1870, 4
          %v1877 = vrot.slane %v1871, 4
          %v1878 = vsel %vm874, %v1876, %v1877
          %v1879 = vrot.slane %v1872, 4
          %v1880 = vsel %vm874, %v1877, %v1879
          %1881 = vrot.lane.b32.xlu0 %v1878, 125
          %v1882 = vpop.permute.xlu0 %1881
          %1883 = vrot.lane.b32.xlu0 %v1880, 125
          %v1884 = vpop.permute.xlu0 %1883
          %v1887 = vadd.f32 %v1807, %v1882
          %v1888 = vadd.f32 %v1808, %v1884
          %v1889 = vstv %s370
          %v1890 = vmul.f32 %v1889, %v284
          %v1891 = vmul.f32 %v1889, %v285
          %v1892 = vmul.f32 %v1889, %v286
          %v1896 = vrot.slane %v1890, 4
          %v1897 = vrot.slane %v1891, 4
          %v1898 = vsel %vm874, %v1896, %v1897
          %v1899 = vrot.slane %v1892, 4
          %v1900 = vsel %vm874, %v1897, %v1899
          %1901 = vrot.lane.b32.xlu0 %v1898, 125
          %v1902 = vpop.permute.xlu0 %1901
          %1903 = vrot.lane.b32.xlu0 %v1900, 125
          %v1904 = vpop.permute.xlu0 %1903
          %v1907 = vadd.f32 %v1827, %v1902
          %v1908 = vadd.f32 %v1828, %v1904
          %v1909 = vstv %s371
          %v1910 = vmul.f32 %v1909, %v284
          %v1911 = vmul.f32 %v1909, %v285
          %v1912 = vmul.f32 %v1909, %v286
          %v1916 = vrot.slane %v1910, 5
          %v1917 = vrot.slane %v1911, 5
          %v1918 = vsel %vm999, %v1916, %v1917
          %v1919 = vrot.slane %v1912, 5
          %v1920 = vsel %vm999, %v1917, %v1919
          %v1923 = vadd.f32 %v1847, %v1918
          %v1924 = vadd.f32 %v1848, %v1920
          %v1925 = vstv %s372
          %v1926 = vmul.f32 %v1925, %v284
          %v1927 = vmul.f32 %v1925, %v285
          %v1928 = vmul.f32 %v1925, %v286
          %v1932 = vrot.slane %v1926, 5
          %v1933 = vrot.slane %v1927, 5
          %v1934 = vsel %vm999, %v1932, %v1933
          %v1935 = vrot.slane %v1928, 5
          %v1936 = vsel %vm999, %v1933, %v1935
          %v1939 = vadd.f32 %v1867, %v1934
          %v1940 = vadd.f32 %v1868, %v1936
          %v1941 = vstv %s373
          %v1942 = vmul.f32 %v1941, %v284
          %v1943 = vmul.f32 %v1941, %v285
          %v1944 = vmul.f32 %v1941, %v286
          %v1948 = vrot.slane %v1942, 5
          %v1949 = vrot.slane %v1943, 5
          %v1950 = vsel %vm999, %v1948, %v1949
          %v1951 = vrot.slane %v1944, 5
          %v1952 = vsel %vm999, %v1949, %v1951
          %v1955 = vadd.f32 %v1887, %v1950
          %v1956 = vadd.f32 %v1888, %v1952
          %v1957 = vstv %s374
          %v1958 = vmul.f32 %v1957, %v284
          %v1959 = vmul.f32 %v1957, %v285
          %v1960 = vmul.f32 %v1957, %v286
          %v1964 = vrot.slane %v1958, 5
          %v1965 = vrot.slane %v1959, 5
          %v1966 = vsel %vm999, %v1964, %v1965
          %v1967 = vrot.slane %v1960, 5
          %v1968 = vsel %vm999, %v1965, %v1967
          %v1971 = vadd.f32 %v1907, %v1966
          %v1972 = vadd.f32 %v1908, %v1968
          %v1973 = vstv %s375
          %v1974 = vmul.f32 %v1973, %v284
          %v1975 = vmul.f32 %v1973, %v285
          %v1976 = vmul.f32 %v1973, %v286
          %v1980 = vrot.slane %v1974, 5
          %v1981 = vrot.slane %v1975, 5
          %v1982 = vsel %vm999, %v1980, %v1981
          %v1983 = vrot.slane %v1976, 5
          %v1984 = vsel %vm999, %v1981, %v1983
          %1985 = vrot.lane.b32.xlu0 %v1982, 124
          %v1986 = vpop.permute.xlu0 %1985
          %1987 = vrot.lane.b32.xlu0 %v1984, 124
          %v1988 = vpop.permute.xlu0 %1987
          %v1991 = vadd.f32 %v1923, %v1986
          %v1992 = vadd.f32 %v1924, %v1988
          %v1993 = vstv %s376
          %v1994 = vmul.f32 %v1993, %v284
          %v1995 = vmul.f32 %v1993, %v285
          %v1996 = vmul.f32 %v1993, %v286
          %v2000 = vrot.slane %v1994, 5
          %v2001 = vrot.slane %v1995, 5
          %v2002 = vsel %vm999, %v2000, %v2001
          %v2003 = vrot.slane %v1996, 5
          %v2004 = vsel %vm999, %v2001, %v2003
          %2005 = vrot.lane.b32.xlu0 %v2002, 124
          %v2006 = vpop.permute.xlu0 %2005
          %2007 = vrot.lane.b32.xlu0 %v2004, 124
          %v2008 = vpop.permute.xlu0 %2007
          %v2011 = vadd.f32 %v1939, %v2006
          %v2012 = vadd.f32 %v1940, %v2008
          %v2013 = vstv %s377
          %v2014 = vmul.f32 %v2013, %v284
          %v2015 = vmul.f32 %v2013, %v285
          %v2016 = vmul.f32 %v2013, %v286
          %v2020 = vrot.slane %v2014, 5
          %v2021 = vrot.slane %v2015, 5
          %v2022 = vsel %vm999, %v2020, %v2021
          %v2023 = vrot.slane %v2016, 5
          %v2024 = vsel %vm999, %v2021, %v2023
          %2025 = vrot.lane.b32.xlu0 %v2022, 124
          %v2026 = vpop.permute.xlu0 %2025
          %2027 = vrot.lane.b32.xlu0 %v2024, 124
          %v2028 = vpop.permute.xlu0 %2027
          %v2031 = vadd.f32 %v1955, %v2026
          %v2032 = vadd.f32 %v1956, %v2028
          %v2033 = vstv %s378
          %v2034 = vmul.f32 %v2033, %v284
          %v2035 = vmul.f32 %v2033, %v285
          %v2036 = vmul.f32 %v2033, %v286
          %v2040 = vrot.slane %v2034, 6
          %v2041 = vrot.slane %v2035, 6
          %v2042 = vsel %vm1140, %v2040, %v2041
          %v2043 = vrot.slane %v2036, 6
          %v2044 = vsel %vm1140, %v2041, %v2043
          %2045 = vrot.lane.b32.xlu0 %v2042, 3
          %v2046 = vpop.permute.xlu0 %2045
          %2047 = vrot.lane.b32.xlu0 %v2044, 3
          %v2048 = vpop.permute.xlu0 %2047
          %v2051 = vadd.f32 %v1971, %v2046
          %v2052 = vadd.f32 %v1972, %v2048
          %v2053 = vstv %s379
          %v2054 = vmul.f32 %v2053, %v284
          %v2055 = vmul.f32 %v2053, %v285
          %v2056 = vmul.f32 %v2053, %v286
          %v2060 = vrot.slane %v2054, 6
          %v2061 = vrot.slane %v2055, 6
          %v2062 = vsel %vm1140, %v2060, %v2061
          %v2063 = vrot.slane %v2056, 6
          %v2064 = vsel %vm1140, %v2061, %v2063
          %2065 = vrot.lane.b32.xlu0 %v2062, 127
          %v2066 = vpop.permute.xlu0 %2065
          %2067 = vrot.lane.b32.xlu0 %v2064, 127
          %v2068 = vpop.permute.xlu0 %2067
          %v2071 = vadd.f32 %v1991, %v2066
          %v2072 = vadd.f32 %v1992, %v2068
          %v2073 = vstv %s380
          %v2074 = vmul.f32 %v2073, %v284
          %v2075 = vmul.f32 %v2073, %v285
          %v2076 = vmul.f32 %v2073, %v286
          %v2080 = vrot.slane %v2074, 6
          %v2081 = vrot.slane %v2075, 6
          %v2082 = vsel %vm1140, %v2080, %v2081
          %v2083 = vrot.slane %v2076, 6
          %v2084 = vsel %vm1140, %v2081, %v2083
          %2085 = vrot.lane.b32.xlu0 %v2082, 127
          %v2086 = vpop.permute.xlu0 %2085
          %2087 = vrot.lane.b32.xlu0 %v2084, 127
          %v2088 = vpop.permute.xlu0 %2087
          %v2091 = vadd.f32 %v2011, %v2086
          %v2092 = vadd.f32 %v2012, %v2088
          %v2093 = vstv %s381
          %v2094 = vmul.f32 %v2093, %v284
          %v2095 = vmul.f32 %v2093, %v285
          %v2096 = vmul.f32 %v2093, %v286
          %v2100 = vrot.slane %v2094, 6
          %v2101 = vrot.slane %v2095, 6
          %v2102 = vsel %vm1140, %v2100, %v2101
          %v2103 = vrot.slane %v2096, 6
          %v2104 = vsel %vm1140, %v2101, %v2103
          %2105 = vrot.lane.b32.xlu0 %v2102, 127
          %v2106 = vpop.permute.xlu0 %2105
          %2107 = vrot.lane.b32.xlu0 %v2104, 127
          %v2108 = vpop.permute.xlu0 %2107
          %v2111 = vadd.f32 %v2031, %v2106
          %v2112 = vadd.f32 %v2032, %v2108
          %v2113 = vstv %s382
          %v2114 = vmul.f32 %v2113, %v284
          %v2115 = vmul.f32 %v2113, %v285
          %v2116 = vmul.f32 %v2113, %v286
          %v2120 = vrot.slane %v2114, 6
          %v2121 = vrot.slane %v2115, 6
          %v2122 = vsel %vm1140, %v2120, %v2121
          %v2123 = vrot.slane %v2116, 6
          %v2124 = vsel %vm1140, %v2121, %v2123
          %2125 = vrot.lane.b32.xlu0 %v2122, 127
          %v2126 = vpop.permute.xlu0 %2125
          %2127 = vrot.lane.b32.xlu0 %v2124, 127
          %v2128 = vpop.permute.xlu0 %2127
          %v2131 = vadd.f32 %v2051, %v2126
          %v2132 = vadd.f32 %v2052, %v2128
          %v2133 = vstv %s383
          %v2134 = vmul.f32 %v2133, %v284
          %v2135 = vmul.f32 %v2133, %v285
          %v2136 = vmul.f32 %v2133, %v286
          %v2140 = vrot.slane %v2134, 6
          %v2141 = vrot.slane %v2135, 6
          %v2142 = vsel %vm1140, %v2140, %v2141
          %v2143 = vrot.slane %v2136, 6
          %v2144 = vsel %vm1140, %v2141, %v2143
          %2145 = vrot.lane.b32.xlu0 %v2142, 123
          %v2146 = vpop.permute.xlu0 %2145
          %2147 = vrot.lane.b32.xlu0 %v2144, 123
          %v2148 = vpop.permute.xlu0 %2147
          %v2151 = vadd.f32 %v2071, %v2146
          %v2152 = vadd.f32 %v2072, %v2148
          %v2153 = vstv %s384
          %v2154 = vmul.f32 %v2153, %v284
          %v2155 = vmul.f32 %v2153, %v285
          %v2156 = vmul.f32 %v2153, %v286
          %v2160 = vrot.slane %v2154, 6
          %v2161 = vrot.slane %v2155, 6
          %v2162 = vsel %vm1140, %v2160, %v2161
          %v2163 = vrot.slane %v2156, 6
          %v2164 = vsel %vm1140, %v2161, %v2163
          %2165 = vrot.lane.b32.xlu0 %v2162, 123
          %v2166 = vpop.permute.xlu0 %2165
          %2167 = vrot.lane.b32.xlu0 %v2164, 123
          %v2168 = vpop.permute.xlu0 %2167
          %v2171 = vadd.f32 %v2091, %v2166
          %v2172 = vadd.f32 %v2092, %v2168
          %2175 = vrot.lane.b32.xlu0 %v2171, 127
          %v2176 = vpop.permute.xlu0 %2175
          %2177 = vrot.lane.b32.xlu0 %v2172, 127
          %v2178 = vpop.permute.xlu0 %2177
          %v2181 = vadd.f32 %v2151, %v2176
          %v2182 = vadd.f32 %v2152, %v2178
          %2185 = vrot.lane.b32.xlu0 %v2131, 127
          %v2186 = vpop.permute.xlu0 %2185
          %2187 = vrot.lane.b32.xlu0 %v2132, 127
          %v2188 = vpop.permute.xlu0 %2187
          %v2191 = vadd.f32 %v2111, %v2186
          %v2192 = vadd.f32 %v2112, %v2188
          %2195 = vrot.lane.b32.xlu0 %v2191, 126
          %v2196 = vpop.permute.xlu0 %2195
          %2197 = vrot.lane.b32.xlu0 %v2192, 126
          %v2198 = vpop.permute.xlu0 %2197
          %v2201 = vadd.f32 %v2181, %v2196
          %v2202 = vadd.f32 %v2182, %v2198
          %v2203 = vxor.u32 %v2201, 2147483648
          %v2204 = vxor.u32 %v2202, 2147483648
          %v2205 = vmul.f32 %v2203, 1.442695
          %v2206 = vpow.pop %v2205
          %v2207 = vmul.f32 %v2204, 1.442695
          %v2208 = vpow.pop %v2207
          %v2209 = vadd.f32 %v2206, 1.0
          %v2210 = vadd.f32 %v2208, 1.0
          %v2211 = vrcp.pop %v2209
          %v2212 = vmul.f32 1.0, %v2211
          %v2213 = vrcp.pop %v2210
          %v2214 = vmul.f32 1.0, %v2213
          %vm2215 = vcmask 130048
          %2216 = vst.msk [vmem:[%s192] sm:$0xff] %vm2215, %v2212
          %2217 = vst.msk [vmem:[%s192 + $0x8] sm:$0xff] %vm2215, %v2214
        $region48: #{tpu_custom_call.1} parent=27 // pred_fallthru
          _
        %s2218 = sand.u32 %s89, 1
        %s2219 = scalar_lea.sflag [#allocation6], %s2218
        %s2220 = sand.u32 %s89, 1
        %s2221 = smul.addr %s2220, 16
        %s2222 = scalar_lea.vmem [#allocation9], %s2221
        // Predicated region
        $region49: #{tpu_custom_call.1} parent=27 // pred_check
          %p2223 = pneg %p99
        $region50: #{tpu_custom_call.1} parent=27 // pred_check_branch
          %2225 = sbr.rel (%p2223) target = $region52
        $region51: #{tpu_custom_call.1} parent=27 // pred_region
          %s2227 = ssub.s32 256, 256
          %2228 = vsyncadd %s2219, %s2227
          %s2229 = smul.addr %s24, 2
          %s2230 = smul.addr %s2229, 128
          %s2231 = scalar_lea.hbm %s2, %s2230
          %s2232 = sshll.u32 %s2222, 4
          %s2233 = int_to_ptr.vmem [resolvable:$true] %s2232
          %2238 = dma.vmem_to_hbm [thread:$0]  %s2233, 256, %s2231, %s2219, 128, 128, 8
        $region52: #{tpu_custom_call.1} parent=27 // pred_fallthru
          _
      $region28: #{tpu_custom_call.1} parent=5 // pred_fallthru
        _
      %p2239 = scmp.le.s32.totalorder 2, %s15
      // Predicated region
      $region53: #{tpu_custom_call.1} parent=5 // pred_check
        %p2240 = pneg %p2239
      $region54: #{tpu_custom_call.1} parent=5 // pred_check_branch
        %2242 = sbr.rel (%p2240) target = $region56
      $region55: #{tpu_custom_call.1} parent=5 // pred_region
        %s2243 = ssub.s32 %s15, 2
        // Predicated region
        $region57: #{tpu_custom_call.1} parent=55 // pred_check
          %p2244 = pneg %p105
        $region58: #{tpu_custom_call.1} parent=55 // pred_check_branch
          %2246 = sbr.rel (%p2244) target = $region60
        $region59: #{tpu_custom_call.1} parent=55 // pred_region
          %s2247 = sand.u32 %s90, 1
          %s2248 = scalar_lea.sflag [#allocation6], %s2247
          %s2249 = sand.u32 %s90, 1
          %s2250 = smul.addr %s2249, 16
          %s2251 = scalar_lea.vmem [#allocation9], %s2250
          %2252 = dma.done %s2248, 256
        $region60: #{tpu_custom_call.1} parent=55 // pred_fallthru
          _
      $region56: #{tpu_custom_call.1} parent=5 // pred_fallthru
        _
    $region6: #{tpu_custom_call.1} parent=1 // loop_footer
      %s19 = sadd.s32 1, %s15
    $region7: #{tpu_custom_call.1} parent=1 // loop_footer_branch
      %14 = sbr.rel target = $region3
    $region8: #{tpu_custom_call.1} parent=1 // loop_exit
      _
    %2253 = vsyncpa [#allocation5], 1
    %s2254 = scalar_lea.sflag [#allocation5], 1
    %2255 = vsyncpa %s2254, 1
    %2256 = vsyncpa [#allocation6], 1
    %s2257 = scalar_lea.sflag [#allocation6], 1
    %2258 = vsyncpa %s2257, 1
    %2259 = vsyncpa [#allocation7], 1
    %s2260 = scalar_lea.sflag [#allocation7], 1
    %2261 = vsyncpa %s2260, 1

</llo_original>
